<compile_context>
chip_gen: v7x
topology: tpu7x:2x2x1
jax: 0.10.0
libtpu: 0.0.40
codegen_flags: <defaults>
</compile_context>

<pallas_src>
import math
from functools import partial

import numpy as np
import jax
import jax.numpy as jnp
from jax.experimental import pallas as pl
from jax.experimental.pallas import tpu as pltpu

NUM_HEADING_BIN = 12
NUM_SIZE_CLUSTER = 8
NUM_MASK_CLASSES = 2

# Deterministic mean-size table (NUM_SIZE_CLUSTER, 3) -- synthetic stand-in for
# g_mean_size_arr (per-cluster (l, w, h)).
G_MEAN_SIZE_ARR = np.array(
    [
        [3.88, 1.63, 1.53],
        [0.84, 0.60, 1.76],
        [1.76, 0.66, 1.74],
        [16.17, 2.58, 3.23],
        [3.86, 1.60, 1.46],
        [12.34, 2.36, 3.42],
        [0.80, 0.77, 1.15],
        [1.92, 0.87, 1.29],
    ],
    dtype=np.float32,
)

# Corner sign pattern (already includes the /2):
#   row 0 -> x corners (scaled by l), row 1 -> y corners (h), row 2 -> z corners (w)
CORNER_SIGNS = np.array(
    [
        [0.5, 0.5, -0.5, -0.5, 0.5, 0.5, -0.5, -0.5],
        [0.5, 0.5, 0.5, 0.5, -0.5, -0.5, -0.5, -0.5],
        [0.5, -0.5, -0.5, 0.5, 0.5, -0.5, -0.5, 0.5],
    ],
    dtype=np.float32,
)


# ------------------------------------------------------------------ packed slab layout
def _align8(n):
    return ((n + 7) // 8) * 8


_FIELD_ROWS = (
    ("center_pred", 3),
    ("center1", 3),
    ("box_center", 3),
    ("heading_scores", NUM_HEADING_BIN),
    ("hres_norm", NUM_HEADING_BIN),
    ("hres", NUM_HEADING_BIN),
    ("angle_res", 1),
    ("size_scores", NUM_SIZE_CLUSTER),
    ("sres_norm", 3 * NUM_SIZE_CLUSTER),   # dim-major: row = d*NS + s
    ("sres", 3 * NUM_SIZE_CLUSTER),        # dim-major: row = d*NS + s
    ("size_res_t", 3),
    ("g_mean", 3 * NUM_SIZE_CLUSTER),      # constant, broadcast over B
    ("hbc", NUM_HEADING_BIN),              # constant, broadcast over B
    ("signs", 24),                         # constant, rows 0..7 sx, 8..15 sy, 16..23 sz
    ("angle_class", 1),                    # int class id stored as float
    ("size_class", 1),                     # int class id stored as float
)
_OFF = {}
_off = 0
for _n, _r in _FIELD_ROWS:
    _OFF[_n] = _off
    _off += _align8(_r)
SLAB_ROWS = _off


# ----------------------------------------------------------------------------- kernel
def _smooth_l1(x):
    ax = jnp.abs(x)
    return jnp.where(ax < 1.0, 0.5 * x * x, ax - 0.5)


def _huber_mean(x, delta):
    # delta^2 * SmoothL1Loss(x/delta, 0, reduction='mean'); x is 2D -> result (1,1)
    return (delta * delta) * jnp.mean(_smooth_l1(x / delta), keepdims=True)


def frustum_loss_kernel(
    l0_ref,     # (B, N)          class-0 mask logits (native dtype)
    l1_ref,     # (B, N)          class-1 mask logits (native dtype)
    label_ref,  # (B, N)   i32    point labels in {0, 1}
    slab_ref,   # (SLAB_ROWS, B) f32   packed per-box tensors + constants
    out_ref,    # (1, 1)   f32
    *,
    corner_loss_weight,
    box_loss_weight,
):
    f32 = jnp.float32
    NH = NUM_HEADING_BIN
    NS = NUM_SIZE_CLUSTER
    PI = f32(math.pi)
    B = slab_ref.shape[1]

    def fld(name, rows, row_off=0):
        return slab_ref[pl.ds(_OFF[name] + row_off, rows), :]

    # ---------------- binary mask cross entropy (closed form, only O(B*N) term) ------
    l0 = l0_ref[...].astype(f32)
    l1 = l1_ref[...].astype(f32)
    y = label_ref[...].astype(f32)
    diff = (l1 - l0) * (1.0 - 2.0 * y)                 # CE = softplus(diff)
    ce = jnp.maximum(diff, 0.0) + jnp.log(1.0 + jnp.exp(-jnp.abs(diff)))
    mask_loss = jnp.mean(ce, keepdims=True)            # (1, 1)

    # ---------------- center regression losses (feature-major, B on lanes) -----------
    c_pred = fld("center_pred", 3)                      # (3, B)
    c1 = fld("center1", 3)
    box_c = fld("box_center", 3)
    d = box_c - c_pred
    center_loss = _huber_mean(jnp.sqrt(jnp.sum(d * d, axis=0, keepdims=True)), 2.0)
    d1 = box_c - c1
    stage1_center_loss = _huber_mean(jnp.sqrt(jnp.sum(d1 * d1, axis=0, keepdims=True)), 1.0)

    # ---------------- heading classification / residual ----------------
    hs = fld("heading_scores", NH)                      # (NH, B)
    ac = fld("angle_class", 1)                          # (1, B) float class id
    h_iota = jax.lax.broadcasted_iota(jnp.int32, (NH, B), 0).astype(f32)
    hcls = (h_iota == ac).astype(f32)                   # one-hot (NH, B)
    h_max = jnp.max(hs, axis=0, keepdims=True)
    h_lse = h_max + jnp.log(jnp.sum(jnp.exp(hs - h_max), axis=0, keepdims=True))
    heading_class_loss = jnp.mean(
        h_lse - jnp.sum(hcls * hs, axis=0, keepdims=True), keepdims=True)

    ares = fld("angle_res", 1)                          # (1, B)
    pred_hrn = jnp.sum(hcls * fld("hres_norm", NH), axis=0, keepdims=True)
    heading_residual_normalized_loss = _huber_mean(pred_hrn - ares / (PI / NH), 1.0)

    # ---------------- size classification / residual ----------------
    ss = fld("size_scores", NS)                         # (NS, B)
    sc = fld("size_class", 1)                           # (1, B)
    s_iota = jax.lax.broadcasted_iota(jnp.int32, (NS, B), 0).astype(f32)
    scls = (s_iota == sc).astype(f32)                   # one-hot (NS, B)
    s_max = jnp.max(ss, axis=0, keepdims=True)
    s_lse = s_max + jnp.log(jnp.sum(jnp.exp(ss - s_max), axis=0, keepdims=True))
    size_class_loss = jnp.mean(
        s_lse - jnp.sum(scls * ss, axis=0, keepdims=True), keepdims=True)

    srt = fld("size_res_t", 3)                          # (3, B)
    gm = [fld("g_mean", NS, dd * NS) for dd in range(3)]     # (NS, B) per dim
    srn = [fld("sres_norm", NS, dd * NS) for dd in range(3)]
    srs = [fld("sres", NS, dd * NS) for dd in range(3)]

    def sel(blk):                                       # one-hot select over NS -> (1,B)
        return jnp.sum(scls * blk, axis=0, keepdims=True)

    sdist_sq = None
    for dd in range(3):
        srn_lab_d = srt[dd:dd + 1, :] / sel(gm[dd])
        e = srn_lab_d - sel(srn[dd])
        sdist_sq = e * e if sdist_sq is None else sdist_sq + e * e
    size_residual_normalized_loss = _huber_mean(jnp.sqrt(sdist_sq), 1.0)

    # ---------------- corners loss ----------------
    hbc = fld("hbc", NH)                                # (NH, B)
    sx = fld("signs", 8, 0)                             # (8, B)
    sy = fld("signs", 8, 8)
    sz = fld("signs", 8, 16)

    # predicted corners: one-hot (heading,size) weighted sum of get_box3d_corners;
    # with exact one-hots the weighted sum factorizes exactly.
    headings_all = fld("hres", NH) + hbc
    cos_w = jnp.sum(hcls * jnp.cos(headings_all), axis=0, keepdims=True)   # (1, B)
    sin_w = jnp.sum(hcls * jnp.sin(headings_all), axis=0, keepdims=True)

    # NOTE: reproduces the original torch code: sizes = (g_mean + res) + res
    l_sel = sel(gm[0] + 2.0 * srs[0])
    w_sel = sel(gm[1] + 2.0 * srs[1])
    hgt_sel = sel(gm[2] + 2.0 * srs[2])

    xw = sx * l_sel                                     # (8, B)
    yw = sy * hgt_sel
    zw = sz * w_sel
    xp = cos_w * xw + sin_w * zw + c_pred[0:1, :]
    yp = yw + c_pred[1:2, :]
    zp = -sin_w * xw + cos_w * zw + c_pred[2:3, :]

    # ground-truth corners
    heading_label = jnp.sum(hcls * (ares + hbc), axis=0, keepdims=True)    # (1, B)
    lg = sel(gm[0] + srt[0:1, :])
    wg = sel(gm[1] + srt[1:2, :])
    hg = sel(gm[2] + srt[2:3, :])
    xgc = sx * lg
    ygc = sy * hg
    zgc = sz * wg

    cg = jnp.cos(heading_label)
    sg = jnp.sin(heading_label)
    rx = cg * xgc + sg * zgc                            # rotated gt corners (no trans.)
    rz = -sg * xgc + cg * zgc
    bx = box_c[0:1, :]
    bz = box_c[2:3, :]
    dy = yp - (ygc + box_c[1:2, :])
    dy2 = dy * dy
    # gt box; pi-flipped box reuses cg/sg via cos(h+pi) = -cos(h), sin(h+pi) = -sin(h)
    dgx = xp - (rx + bx)
    dgz = zp - (rz + bz)
    d_gt = jnp.sqrt(dgx * dgx + dy2 + dgz * dgz)        # (8, B)
    dfx = xp - (bx - rx)
    dfz = zp - (bz - rz)
    d_fl = jnp.sqrt(dfx * dfx + dy2 + dfz * dfz)

    # corners huber delta == 1.0 -> plain smooth-L1 per element
    loss_gt = jnp.mean(_smooth_l1(d_gt), axis=0, keepdims=True)            # (1, B)
    loss_fl = jnp.mean(_smooth_l1(d_fl), axis=0, keepdims=True)
    corners_loss = jnp.mean(jnp.minimum(loss_gt, loss_fl), keepdims=True)

    total = mask_loss + box_loss_weight * (
        center_loss
        + heading_class_loss
        + size_class_loss
        + heading_residual_normalized_loss * 20.0
        + size_residual_normalized_loss * 20.0
        + stage1_center_loss
        + corner_loss_weight * corners_loss
    )
    out_ref[...] = total


# ----------------------------------------------------------------------------- wrapper
def frustum_loss_pallas(
    pipeline_output,
    target,
    g_mean_size_arr,
    heading_bin_centers,
    corner_loss_weight=0.001,
    box_loss_weight=1.0,
):
    ml = pipeline_output["mask_logits"]
    B, C, N = ml.shape
    assert C == NUM_MASK_CLASSES == 2, "closed-form binary CE assumes 2 mask classes"
    NH, NS = NUM_HEADING_BIN, NUM_SIZE_CLUSTER
    f32 = jnp.float32

    # mask logits stay in their native dtype (bf16 stays bf16); upcast happens in-kernel
    l0 = ml[:, 0, :]
    l1 = ml[:, 1, :]
    labels = target["label"].astype(jnp.int32)

    def tr(x):                     # (B, F) -> (F, B)
        return jnp.transpose(x.astype(f32), (1, 0))

    def dim_major(x):              # (B, NS, 3) -> (3*NS, B), row = d*NS + s
        return jnp.transpose(x.astype(f32), (2, 1, 0)).reshape(3 * NS, B)

    gm = jnp.asarray(g_mean_size_arr, f32)                     # (NS, 3)
    hbc = jnp.asarray(heading_bin_centers, f32)                # (NH,)
    fields = {
        "center_pred": tr(pipeline_output["center_prediction"]),
        "center1": tr(pipeline_output["center_1"]),
        "box_center": tr(target["box3d_center"]),
        "heading_scores": tr(pipeline_output["heading_scores"]),
        "hres_norm": tr(pipeline_output["heading_residuals_normalized"]),
        "hres": tr(pipeline_output["heading_residuals"]),
        "angle_res": target["angle_residual"].astype(f32).reshape(1, B),
        "size_scores": tr(pipeline_output["size_scores"]),
        "sres_norm": dim_major(pipeline_output["size_residuals_normalized"]),
        "sres": dim_major(pipeline_output["size_residuals"]),
        "size_res_t": tr(target["size_residual"]),
        "g_mean": jnp.broadcast_to(jnp.transpose(gm, (1, 0)).reshape(3 * NS, 1), (3 * NS, B)),
        "hbc": jnp.broadcast_to(hbc.reshape(NH, 1), (NH, B)),
        "signs": jnp.broadcast_to(jnp.asarray(CORNER_SIGNS, f32).reshape(24, 1), (24, B)),
        "angle_class": target["angle_class"].astype(f32).reshape(1, B),
        "size_class": target["size_class"].astype(f32).reshape(1, B),
    }
    pieces = []
    for name, rows in _FIELD_ROWS:
        x = fields[name]
        pad = _align8(rows) - rows
        if pad:
            x = jnp.pad(x, ((0, pad), (0, 0)))
        pieces.append(x)
    slab = jnp.concatenate(pieces, axis=0)                     # (SLAB_ROWS, B) f32

    kernel = partial(
        frustum_loss_kernel,
        corner_loss_weight=float(corner_loss_weight),
        box_loss_weight=float(box_loss_weight),
    )
    vmem = pltpu.MemorySpace.VMEM
    # TODO(synk): for very large B*N on v7x (2 TensorCores), grid the mask-CE over
    # batch tiles with dimension_semantics=("parallel",) and per-tile partial sums;
    # a single grid point is optimal for v5e/v6e and for the shapes exercised here.
    out = pl.pallas_call(
        kernel,
        out_shape=jax.ShapeDtypeStruct((1, 1), jnp.float32),
        in_specs=[pl.BlockSpec(memory_space=vmem)] * 4,
        out_specs=pl.BlockSpec(memory_space=vmem),
    )(l0, l1, labels, slab)
    return out[0, 0]


# ----------------------------------------------------------------------------- reference (plain JAX, mirrors the torch code)
def reference_loss(po, tg, g_mean, hbc, corner_loss_weight=0.001, box_loss_weight=1.0):
    def smooth_l1(x):
        ax = jnp.abs(x)
        return jnp.where(ax < 1.0, 0.5 * x * x, ax - 0.5)

    def huber(x, delta):
        return delta * delta * jnp.mean(smooth_l1(x / delta))

    def ce(logits, labels):
        lse = jax.scipy.special.logsumexp(logits, axis=1)
        oh = jax.nn.one_hot(labels, logits.shape[1], axis=1, dtype=logits.dtype)
        return jnp.mean(lse - jnp.sum(oh * logits, axis=1))

    def corners_helper(centers, headings, sizes):
        l = sizes[:, 0:1]
        w = sizes[:, 1:2]
        h = sizes[:, 2:3]
        x_c = jnp.concatenate([l / 2, l / 2, -l / 2, -l / 2, l / 2, l / 2, -l / 2, -l / 2], axis=1)
        y_c = jnp.concatenate([h / 2, h / 2, h / 2, h / 2, -h / 2, -h / 2, -h / 2, -h / 2], axis=1)
        z_c = jnp.concatenate([w / 2, -w / 2, -w / 2, w / 2, w / 2, -w / 2, -w / 2, w / 2], axis=1)
        corners = jnp.stack([x_c, y_c, z_c], axis=1)
        c = jnp.cos(headings)
        s = jnp.sin(headings)
        zeros = jnp.zeros_like(c)
        ones = jnp.ones_like(c)
        R = jnp.stack(
            [
                jnp.stack([c, zeros, s], axis=1),
                jnp.stack([zeros, ones, zeros], axis=1),
                jnp.stack([-s, zeros, c], axis=1),
            ],
            axis=1,
        )
        out = jnp.einsum("nij,njk->nik", R, corners) + centers[:, :, None]
        return jnp.transpose(out, (0, 2, 1))

    B = tg["label"].shape[0]
    NH, NS = NUM_HEADING_BIN, NUM_SIZE_CLUSTER
    mask_loss = ce(po["mask_logits"], tg["label"])
    center_loss = huber(jnp.linalg.norm(tg["box3d_center"] - po["center_prediction"], axis=-1), 2.0)
    stage1_center_loss = huber(jnp.linalg.norm(tg["box3d_center"] - po["center_1"], axis=-1), 1.0)
    heading_class_loss = ce(po["heading_scores"], tg["angle_class"])
    hcls = jax.nn.one_hot(tg["angle_class"], NH, dtype=jnp.float32)
    hres_label = tg["angle_residual"] / (np.pi / NH)
    heading_residual_normalized_loss = huber(
        jnp.sum(po["heading_residuals_normalized"] * hcls, axis=1) - hres_label, 1.0
    )
    size_class_loss = ce(po["size_scores"], tg["size_class"])
    scls = jax.nn.one_hot(tg["size_class"], NS, dtype=jnp.float32)
    scls_t = scls[:, :, None]
    pred_srn = jnp.sum(po["size_residuals_normalized"] * scls_t, axis=1)
    mean_size_label = jnp.sum(scls_t * g_mean[None], axis=1)
    srn = tg["size_residual"] / mean_size_label
    size_residual_normalized_loss = huber(jnp.linalg.norm(srn - pred_srn, axis=-1), 1.0)

    headings = po["heading_residuals"] + hbc[None]
    sizes = g_mean[None] + 2.0 * po["size_residuals"]
    sizes_b = jnp.broadcast_to(sizes[:, None], (B, NH, NS, 3)).reshape(-1, 3)
    headings_b = jnp.broadcast_to(headings[:, :, None], (B, NH, NS)).reshape(-1)
    centers_b = jnp.broadcast_to(po["center_prediction"][:, None, None], (B, NH, NS, 3)).reshape(-1, 3)
    corners_3d = corners_helper(centers_b, headings_b, sizes_b).reshape(B, NH, NS, 8, 3)
    gt_mask = hcls[:, :, None] * scls[:, None, :]
    corners_3d_pred = jnp.sum(gt_mask[..., None, None] * corners_3d, axis=(1, 2))
    heading_label = jnp.sum(hcls * (tg["angle_residual"][:, None] + hbc[None]), axis=1)
    size_label = jnp.sum(scls_t * (g_mean[None] + tg["size_residual"][:, None, :]), axis=1)
    corners_gt = corners_helper(tg["box3d_center"], heading_label, size_label)
    corners_fl = corners_helper(tg["box3d_center"], heading_label + np.pi, size_label)

    def hub_nm(x, delta):
        return delta * delta * smooth_l1(x / delta)

    loss_gt = jnp.mean(hub_nm(jnp.linalg.norm(corners_3d_pred - corners_gt, axis=-1), 1.0), axis=-1)
    loss_fl = jnp.mean(hub_nm(jnp.linalg.norm(corners_3d_pred - corners_fl, axis=-1), 1.0), axis=-1)
    corners_loss = jnp.mean(jnp.minimum(loss_gt, loss_fl))
    return mask_loss + box_loss_weight * (
        center_loss
        + heading_class_loss
        + size_class_loss
        + heading_residual_normalized_loss * 20
        + size_residual_normalized_loss * 20
        + stage1_center_loss
        + corner_loss_weight * corners_loss
    )


# ----------------------------------------------------------------------------- main
if __name__ == "__main__":
    key = jax.random.PRNGKey(0)
    B, N = 2, 128
    keys = jax.random.split(key, 16)

    pipeline_output = {
        "mask_logits": jax.random.normal(keys[0], (B, NUM_MASK_CLASSES, N), jnp.float32),
        "center_prediction": jax.random.normal(keys[1], (B, 3), jnp.float32) * 2.0,
        "center_1": jax.random.normal(keys[2], (B, 3), jnp.float32) * 2.0,
        "heading_scores": jax.random.normal(keys[3], (B, NUM_HEADING_BIN), jnp.float32),
        "heading_residuals_normalized": jax.random.normal(keys[4], (B, NUM_HEADING_BIN), jnp.float32) * 0.2,
        "heading_residuals": jax.random.normal(keys[5], (B, NUM_HEADING_BIN), jnp.float32) * 0.2,
        "size_scores": jax.random.normal(keys[6], (B, NUM_SIZE_CLUSTER), jnp.float32),
        "size_residuals_normalized": jax.random.normal(keys[7], (B, NUM_SIZE_CLUSTER, 3), jnp.float32) * 0.1,
        "size_residuals": jax.random.normal(keys[8], (B, NUM_SIZE_CLUSTER, 3), jnp.float32) * 0.1,
    }
    target = {
        "label": jax.random.randint(keys[9], (B, N), 0, NUM_MASK_CLASSES),
        "box3d_center": jax.random.normal(keys[10], (B, 3), jnp.float32) * 2.0,
        "angle_class": jax.random.randint(keys[11], (B,), 0, NUM_HEADING_BIN),
        "angle_residual": jax.random.normal(keys[12], (B,), jnp.float32) * 0.1,
        "size_class": jax.random.randint(keys[13], (B,), 0, NUM_SIZE_CLUSTER),
        "size_residual": jax.random.normal(keys[14], (B, 3), jnp.float32) * 0.1,
    }

    g_mean = jnp.asarray(G_MEAN_SIZE_ARR)
    heading_bin_centers = jnp.asarray(
        np.arange(NUM_HEADING_BIN, dtype=np.float32) * (2.0 * np.pi / NUM_HEADING_BIN)
    )

    total = frustum_loss_pallas(pipeline_output, target, g_mean, heading_bin_centers)
    total = jax.block_until_ready(total)

    ref = jax.block_until_ready(reference_loss(pipeline_output, target, g_mean, heading_bin_centers))
    np.testing.assert_allclose(np.asarray(total), np.asarray(ref), rtol=5e-2, atol=5e-2)

    print("KERNEL_OK")
</pallas_src>

<mosaic_0001>
module attributes {stable_mosaic.version = 11 : i64} {
  func.func @frustum_loss_kernel(%arg0: memref<2x128xf32, #tpu.memory_space<vmem>>, %arg1: memref<2x128xf32, #tpu.memory_space<vmem>>, %arg2: memref<2x128xi32, #tpu.memory_space<vmem>>, %arg3: memref<224x2xf32, #tpu.memory_space<vmem>>, %arg4: memref<1x1xf32, #tpu.memory_space<vmem>>) attributes {dimension_semantics = [], scalar_prefetch = 0 : i64, scratch_operands = 0 : i64, tpu.core_type = #tpu.core_type<tc>} {
    %c0 = arith.constant 0 : index
    %c0_0 = arith.constant 0 : index
    %0 = vector.load %arg0[%c0, %c0_0] : memref<2x128xf32, #tpu.memory_space<vmem>>, vector<2x128xf32>
    %c0_1 = arith.constant 0 : index
    %c0_2 = arith.constant 0 : index
    %1 = vector.load %arg1[%c0_1, %c0_2] : memref<2x128xf32, #tpu.memory_space<vmem>>, vector<2x128xf32>
    %c0_3 = arith.constant 0 : index
    %c0_4 = arith.constant 0 : index
    %2 = vector.load %arg2[%c0_3, %c0_4] : memref<2x128xi32, #tpu.memory_space<vmem>>, vector<2x128xi32>
    %3 = arith.sitofp %2 : vector<2x128xi32> to vector<2x128xf32>
    %4 = arith.subf %1, %0 : vector<2x128xf32>
    %cst = arith.constant 2.000000e+00 : f32
    %5 = vector.broadcast %cst : f32 to vector<2x128xf32>
    %6 = arith.mulf %5, %3 : vector<2x128xf32>
    %cst_5 = arith.constant 1.000000e+00 : f32
    %7 = vector.broadcast %cst_5 : f32 to vector<2x128xf32>
    %8 = arith.subf %7, %6 : vector<2x128xf32>
    %9 = arith.mulf %4, %8 : vector<2x128xf32>
    %cst_6 = arith.constant 0.000000e+00 : f32
    %10 = vector.broadcast %cst_6 : f32 to vector<2x128xf32>
    %11 = arith.maximumf %9, %10 : vector<2x128xf32>
    %12 = math.absf %9 : vector<2x128xf32>
    %cst_7 = arith.constant 0.000000e+00 : f32
    %13 = vector.broadcast %cst_7 : f32 to vector<2x128xf32>
    %14 = arith.subf %13, %12 : vector<2x128xf32>
    %15 = math.exp %14 : vector<2x128xf32>
    %cst_8 = arith.constant 1.000000e+00 : f32
    %16 = vector.broadcast %cst_8 : f32 to vector<2x128xf32>
    %17 = arith.addf %16, %15 : vector<2x128xf32>
    %18 = math.log %17 : vector<2x128xf32>
    %19 = arith.addf %11, %18 : vector<2x128xf32>
    %20 = vector.shape_cast %19 : vector<2x128xf32> to vector<1x2x128xf32>
    %cst_9 = arith.constant dense<0.000000e+00> : vector<1xf32>
    %21 = vector.multi_reduction <add>, %20, %cst_9 [1, 2] : vector<1x2x128xf32> to vector<1xf32>
    %22 = vector.shape_cast %21 : vector<1xf32> to vector<1x1x1xf32>
    %23 = vector.extract %22[0, 0, 0] : f32 from vector<1x1x1xf32>
    %24 = vector.broadcast %23 : f32 to vector<1x1xf32>
    %cst_10 = arith.constant 2.560000e+02 : f32
    %25 = vector.broadcast %cst_10 : f32 to vector<1x1xf32>
    %26 = arith.divf %24, %25 : vector<1x1xf32>
    %c0_11 = arith.constant 0 : index
    %c0_12 = arith.constant 0 : index
    %27 = vector.load %arg3[%c0_11, %c0_12] : memref<224x2xf32, #tpu.memory_space<vmem>>, vector<3x2xf32>
    %c8 = arith.constant 8 : index
    %c0_13 = arith.constant 0 : index
    %28 = vector.load %arg3[%c8, %c0_13] : memref<224x2xf32, #tpu.memory_space<vmem>>, vector<3x2xf32>
    %c16 = arith.constant 16 : index
    %c0_14 = arith.constant 0 : index
    %29 = vector.load %arg3[%c16, %c0_14] : memref<224x2xf32, #tpu.memory_space<vmem>>, vector<3x2xf32>
    %30 = arith.subf %29, %27 : vector<3x2xf32>
    %31 = arith.mulf %30, %30 : vector<3x2xf32>
    %cst_15 = arith.constant dense<0.000000e+00> : vector<2xf32>
    %32 = vector.multi_reduction <add>, %31, %cst_15 [0] : vector<3x2xf32> to vector<2xf32>
    %33 = vector.shape_cast %32 : vector<2xf32> to vector<1x2xf32>
    %34 = math.sqrt %33 : vector<1x2xf32>
    %cst_16 = arith.constant 2.000000e+00 : f32
    %35 = vector.broadcast %cst_16 : f32 to vector<1x2xf32>
    %36 = arith.divf %34, %35 : vector<1x2xf32>
    %37 = math.absf %36 : vector<1x2xf32>
    %cst_17 = arith.constant 1.000000e+00 : f32
    %38 = vector.broadcast %cst_17 : f32 to vector<1x2xf32>
    %39 = arith.cmpf olt, %37, %38 : vector<1x2xf32>
    %cst_18 = arith.constant 5.000000e-01 : f32
    %40 = vector.broadcast %cst_18 : f32 to vector<1x2xf32>
    %41 = arith.mulf %40, %36 : vector<1x2xf32>
    %42 = arith.mulf %41, %36 : vector<1x2xf32>
    %cst_19 = arith.constant 5.000000e-01 : f32
    %43 = vector.broadcast %cst_19 : f32 to vector<1x2xf32>
    %44 = arith.subf %37, %43 : vector<1x2xf32>
    %45 = arith.select %39, %42, %44 : vector<1x2xi1>, vector<1x2xf32>
    %46 = vector.shape_cast %45 : vector<1x2xf32> to vector<1x1x2xf32>
    %cst_20 = arith.constant dense<0.000000e+00> : vector<1xf32>
    %47 = vector.multi_reduction <add>, %46, %cst_20 [1, 2] : vector<1x1x2xf32> to vector<1xf32>
    %48 = vector.shape_cast %47 : vector<1xf32> to vector<1x1x1xf32>
    %49 = vector.extract %48[0, 0, 0] : f32 from vector<1x1x1xf32>
    %50 = vector.broadcast %49 : f32 to vector<1x1xf32>
    %cst_21 = arith.constant 2.000000e+00 : f32
    %51 = vector.broadcast %cst_21 : f32 to vector<1x1xf32>
    %52 = arith.divf %50, %51 : vector<1x1xf32>
    %cst_22 = arith.constant 4.000000e+00 : f32
    %53 = vector.broadcast %cst_22 : f32 to vector<1x1xf32>
    %54 = arith.mulf %53, %52 : vector<1x1xf32>
    %55 = arith.subf %29, %28 : vector<3x2xf32>
    %56 = arith.mulf %55, %55 : vector<3x2xf32>
    %cst_23 = arith.constant dense<0.000000e+00> : vector<2xf32>
    %57 = vector.multi_reduction <add>, %56, %cst_23 [0] : vector<3x2xf32> to vector<2xf32>
    %58 = vector.shape_cast %57 : vector<2xf32> to vector<1x2xf32>
    %59 = math.sqrt %58 : vector<1x2xf32>
    %cst_24 = arith.constant 1.000000e+00 : f32
    %60 = vector.broadcast %cst_24 : f32 to vector<1x2xf32>
    %61 = arith.divf %59, %60 : vector<1x2xf32>
    %62 = math.absf %61 : vector<1x2xf32>
    %cst_25 = arith.constant 1.000000e+00 : f32
    %63 = vector.broadcast %cst_25 : f32 to vector<1x2xf32>
    %64 = arith.cmpf olt, %62, %63 : vector<1x2xf32>
    %cst_26 = arith.constant 5.000000e-01 : f32
    %65 = vector.broadcast %cst_26 : f32 to vector<1x2xf32>
    %66 = arith.mulf %65, %61 : vector<1x2xf32>
    %67 = arith.mulf %66, %61 : vector<1x2xf32>
    %cst_27 = arith.constant 5.000000e-01 : f32
    %68 = vector.broadcast %cst_27 : f32 to vector<1x2xf32>
    %69 = arith.subf %62, %68 : vector<1x2xf32>
    %70 = arith.select %64, %67, %69 : vector<1x2xi1>, vector<1x2xf32>
    %71 = vector.shape_cast %70 : vector<1x2xf32> to vector<1x1x2xf32>
    %cst_28 = arith.constant dense<0.000000e+00> : vector<1xf32>
    %72 = vector.multi_reduction <add>, %71, %cst_28 [1, 2] : vector<1x1x2xf32> to vector<1xf32>
    %73 = vector.shape_cast %72 : vector<1xf32> to vector<1x1x1xf32>
    %74 = vector.extract %73[0, 0, 0] : f32 from vector<1x1x1xf32>
    %75 = vector.broadcast %74 : f32 to vector<1x1xf32>
    %cst_29 = arith.constant 2.000000e+00 : f32
    %76 = vector.broadcast %cst_29 : f32 to vector<1x1xf32>
    %77 = arith.divf %75, %76 : vector<1x1xf32>
    %cst_30 = arith.constant 1.000000e+00 : f32
    %78 = vector.broadcast %cst_30 : f32 to vector<1x1xf32>
    %79 = arith.mulf %78, %77 : vector<1x1xf32>
    %c24 = arith.constant 24 : index
    %c0_31 = arith.constant 0 : index
    %80 = vector.load %arg3[%c24, %c0_31] : memref<224x2xf32, #tpu.memory_space<vmem>>, vector<12x2xf32>
    %c208 = arith.constant 208 : index
    %c0_32 = arith.constant 0 : index
    %81 = vector.load %arg3[%c208, %c0_32] : memref<224x2xf32, #tpu.memory_space<vmem>>, vector<1x2xf32>
    %82 = tpu.iota {dimensions = array<i32: 0>} : vector<12x2xi32>
    %83 = arith.sitofp %82 : vector<12x2xi32> to vector<12x2xf32>
    %84 = vector.broadcast %81 : vector<1x2xf32> to vector<12x2xf32>
    %85 = arith.cmpf oeq, %83, %84 : vector<12x2xf32>
    %86 = arith.extui %85 : vector<12x2xi1> to vector<12x2xi32>
    %87 = arith.sitofp %86 : vector<12x2xi32> to vector<12x2xf32>
    %cst_33 = arith.constant dense<0xFF800000> : vector<2xf32>
    %88 = vector.multi_reduction <maximumf>, %80, %cst_33 [0] : vector<12x2xf32> to vector<2xf32>
    %89 = vector.shape_cast %88 : vector<2xf32> to vector<1x2xf32>
    %90 = vector.broadcast %89 : vector<1x2xf32> to vector<12x2xf32>
    %91 = arith.subf %80, %90 : vector<12x2xf32>
    %92 = math.exp %91 : vector<12x2xf32>
    %cst_34 = arith.constant dense<0.000000e+00> : vector<2xf32>
    %93 = vector.multi_reduction <add>, %92, %cst_34 [0] : vector<12x2xf32> to vector<2xf32>
    %94 = vector.shape_cast %93 : vector<2xf32> to vector<1x2xf32>
    %95 = math.log %94 : vector<1x2xf32>
    %96 = arith.addf %89, %95 : vector<1x2xf32>
    %97 = arith.mulf %87, %80 : vector<12x2xf32>
    %cst_35 = arith.constant dense<0.000000e+00> : vector<2xf32>
    %98 = vector.multi_reduction <add>, %97, %cst_35 [0] : vector<12x2xf32> to vector<2xf32>
    %99 = vector.shape_cast %98 : vector<2xf32> to vector<1x2xf32>
    %100 = arith.subf %96, %99 : vector<1x2xf32>
    %101 = vector.shape_cast %100 : vector<1x2xf32> to vector<1x1x2xf32>
    %cst_36 = arith.constant dense<0.000000e+00> : vector<1xf32>
    %102 = vector.multi_reduction <add>, %101, %cst_36 [1, 2] : vector<1x1x2xf32> to vector<1xf32>
    %103 = vector.shape_cast %102 : vector<1xf32> to vector<1x1x1xf32>
    %104 = vector.extract %103[0, 0, 0] : f32 from vector<1x1x1xf32>
    %105 = vector.broadcast %104 : f32 to vector<1x1xf32>
    %cst_37 = arith.constant 2.000000e+00 : f32
    %106 = vector.broadcast %cst_37 : f32 to vector<1x1xf32>
    %107 = arith.divf %105, %106 : vector<1x1xf32>
    %c72 = arith.constant 72 : index
    %c0_38 = arith.constant 0 : index
    %108 = vector.load %arg3[%c72, %c0_38] : memref<224x2xf32, #tpu.memory_space<vmem>>, vector<1x2xf32>
    %c40 = arith.constant 40 : index
    %c0_39 = arith.constant 0 : index
    %109 = vector.load %arg3[%c40, %c0_39] : memref<224x2xf32, #tpu.memory_space<vmem>>, vector<12x2xf32>
    %110 = arith.mulf %87, %109 : vector<12x2xf32>
    %cst_40 = arith.constant dense<0.000000e+00> : vector<2xf32>
    %111 = vector.multi_reduction <add>, %110, %cst_40 [0] : vector<12x2xf32> to vector<2xf32>
    %112 = vector.shape_cast %111 : vector<2xf32> to vector<1x2xf32>
    %cst_41 = arith.constant 3.14159274 : f32
    %cst_42 = arith.constant 1.200000e+01 : f32
    %113 = arith.divf %cst_41, %cst_42 : f32
    %114 = vector.broadcast %113 : f32 to vector<1x2xf32>
    %115 = arith.divf %108, %114 : vector<1x2xf32>
    %116 = arith.subf %112, %115 : vector<1x2xf32>
    %cst_43 = arith.constant 1.000000e+00 : f32
    %117 = vector.broadcast %cst_43 : f32 to vector<1x2xf32>
    %118 = arith.divf %116, %117 : vector<1x2xf32>
    %119 = math.absf %118 : vector<1x2xf32>
    %cst_44 = arith.constant 1.000000e+00 : f32
    %120 = vector.broadcast %cst_44 : f32 to vector<1x2xf32>
    %121 = arith.cmpf olt, %119, %120 : vector<1x2xf32>
    %cst_45 = arith.constant 5.000000e-01 : f32
    %122 = vector.broadcast %cst_45 : f32 to vector<1x2xf32>
    %123 = arith.mulf %122, %118 : vector<1x2xf32>
    %124 = arith.mulf %123, %118 : vector<1x2xf32>
    %cst_46 = arith.constant 5.000000e-01 : f32
    %125 = vector.broadcast %cst_46 : f32 to vector<1x2xf32>
    %126 = arith.subf %119, %125 : vector<1x2xf32>
    %127 = arith.select %121, %124, %126 : vector<1x2xi1>, vector<1x2xf32>
    %128 = vector.shape_cast %127 : vector<1x2xf32> to vector<1x1x2xf32>
    %cst_47 = arith.constant dense<0.000000e+00> : vector<1xf32>
    %129 = vector.multi_reduction <add>, %128, %cst_47 [1, 2] : vector<1x1x2xf32> to vector<1xf32>
    %130 = vector.shape_cast %129 : vector<1xf32> to vector<1x1x1xf32>
    %131 = vector.extract %130[0, 0, 0] : f32 from vector<1x1x1xf32>
    %132 = vector.broadcast %131 : f32 to vector<1x1xf32>
    %cst_48 = arith.constant 2.000000e+00 : f32
    %133 = vector.broadcast %cst_48 : f32 to vector<1x1xf32>
    %134 = arith.divf %132, %133 : vector<1x1xf32>
    %cst_49 = arith.constant 1.000000e+00 : f32
    %135 = vector.broadcast %cst_49 : f32 to vector<1x1xf32>
    %136 = arith.mulf %135, %134 : vector<1x1xf32>
    %c80 = arith.constant 80 : index
    %c0_50 = arith.constant 0 : index
    %137 = vector.load %arg3[%c80, %c0_50] : memref<224x2xf32, #tpu.memory_space<vmem>>, vector<8x2xf32>
    %c216 = arith.constant 216 : index
    %c0_51 = arith.constant 0 : index
    %138 = vector.load %arg3[%c216, %c0_51] : memref<224x2xf32, #tpu.memory_space<vmem>>, vector<1x2xf32>
    %139 = tpu.iota {dimensions = array<i32: 0>} : vector<8x2xi32>
    %140 = arith.sitofp %139 : vector<8x2xi32> to vector<8x2xf32>
    %141 = vector.broadcast %138 : vector<1x2xf32> to vector<8x2xf32>
    %142 = arith.cmpf oeq, %140, %141 : vector<8x2xf32>
    %143 = arith.extui %142 : vector<8x2xi1> to vector<8x2xi32>
    %144 = arith.sitofp %143 : vector<8x2xi32> to vector<8x2xf32>
    %cst_52 = arith.constant dense<0xFF800000> : vector<2xf32>
    %145 = vector.multi_reduction <maximumf>, %137, %cst_52 [0] : vector<8x2xf32> to vector<2xf32>
    %146 = vector.shape_cast %145 : vector<2xf32> to vector<1x2xf32>
    %147 = vector.broadcast %146 : vector<1x2xf32> to vector<8x2xf32>
    %148 = arith.subf %137, %147 : vector<8x2xf32>
    %149 = math.exp %148 : vector<8x2xf32>
    %cst_53 = arith.constant dense<0.000000e+00> : vector<2xf32>
    %150 = vector.multi_reduction <add>, %149, %cst_53 [0] : vector<8x2xf32> to vector<2xf32>
    %151 = vector.shape_cast %150 : vector<2xf32> to vector<1x2xf32>
    %152 = math.log %151 : vector<1x2xf32>
    %153 = arith.addf %146, %152 : vector<1x2xf32>
    %154 = arith.mulf %144, %137 : vector<8x2xf32>
    %cst_54 = arith.constant dense<0.000000e+00> : vector<2xf32>
    %155 = vector.multi_reduction <add>, %154, %cst_54 [0] : vector<8x2xf32> to vector<2xf32>
    %156 = vector.shape_cast %155 : vector<2xf32> to vector<1x2xf32>
    %157 = arith.subf %153, %156 : vector<1x2xf32>
    %158 = vector.shape_cast %157 : vector<1x2xf32> to vector<1x1x2xf32>
    %cst_55 = arith.constant dense<0.000000e+00> : vector<1xf32>
    %159 = vector.multi_reduction <add>, %158, %cst_55 [1, 2] : vector<1x1x2xf32> to vector<1xf32>
    %160 = vector.shape_cast %159 : vector<1xf32> to vector<1x1x1xf32>
    %161 = vector.extract %160[0, 0, 0] : f32 from vector<1x1x1xf32>
    %162 = vector.broadcast %161 : f32 to vector<1x1xf32>
    %cst_56 = arith.constant 2.000000e+00 : f32
    %163 = vector.broadcast %cst_56 : f32 to vector<1x1xf32>
    %164 = arith.divf %162, %163 : vector<1x1xf32>
    %c136 = arith.constant 136 : index
    %c0_57 = arith.constant 0 : index
    %165 = vector.load %arg3[%c136, %c0_57] : memref<224x2xf32, #tpu.memory_space<vmem>>, vector<3x2xf32>
    %c144 = arith.constant 144 : index
    %c0_58 = arith.constant 0 : index
    %166 = vector.load %arg3[%c144, %c0_58] : memref<224x2xf32, #tpu.memory_space<vmem>>, vector<8x2xf32>
    %c152 = arith.constant 152 : index
    %c0_59 = arith.constant 0 : index
    %167 = vector.load %arg3[%c152, %c0_59] : memref<224x2xf32, #tpu.memory_space<vmem>>, vector<8x2xf32>
    %c160 = arith.constant 160 : index
    %c0_60 = arith.constant 0 : index
    %168 = vector.load %arg3[%c160, %c0_60] : memref<224x2xf32, #tpu.memory_space<vmem>>, vector<8x2xf32>
    %c88 = arith.constant 88 : index
    %c0_61 = arith.constant 0 : index
    %169 = vector.load %arg3[%c88, %c0_61] : memref<224x2xf32, #tpu.memory_space<vmem>>, vector<8x2xf32>
    %c96 = arith.constant 96 : index
    %c0_62 = arith.constant 0 : index
    %170 = vector.load %arg3[%c96, %c0_62] : memref<224x2xf32, #tpu.memory_space<vmem>>, vector<8x2xf32>
    %c104 = arith.constant 104 : index
    %c0_63 = arith.constant 0 : index
    %171 = vector.load %arg3[%c104, %c0_63] : memref<224x2xf32, #tpu.memory_space<vmem>>, vector<8x2xf32>
    %c112 = arith.constant 112 : index
    %c0_64 = arith.constant 0 : index
    %172 = vector.load %arg3[%c112, %c0_64] : memref<224x2xf32, #tpu.memory_space<vmem>>, vector<8x2xf32>
    %c120 = arith.constant 120 : index
    %c0_65 = arith.constant 0 : index
    %173 = vector.load %arg3[%c120, %c0_65] : memref<224x2xf32, #tpu.memory_space<vmem>>, vector<8x2xf32>
    %c128 = arith.constant 128 : index
    %c0_66 = arith.constant 0 : index
    %174 = vector.load %arg3[%c128, %c0_66] : memref<224x2xf32, #tpu.memory_space<vmem>>, vector<8x2xf32>
    %175 = vector.extract_strided_slice %165 {offsets = [0, 0], sizes = [1, 2], strides = [1, 1]} : vector<3x2xf32> to vector<1x2xf32>
    %176 = arith.mulf %144, %166 : vector<8x2xf32>
    %cst_67 = arith.constant dense<0.000000e+00> : vector<2xf32>
    %177 = vector.multi_reduction <add>, %176, %cst_67 [0] : vector<8x2xf32> to vector<2xf32>
    %178 = vector.shape_cast %177 : vector<2xf32> to vector<1x2xf32>
    %179 = arith.divf %175, %178 : vector<1x2xf32>
    %180 = arith.mulf %144, %169 : vector<8x2xf32>
    %cst_68 = arith.constant dense<0.000000e+00> : vector<2xf32>
    %181 = vector.multi_reduction <add>, %180, %cst_68 [0] : vector<8x2xf32> to vector<2xf32>
    %182 = vector.shape_cast %181 : vector<2xf32> to vector<1x2xf32>
    %183 = arith.subf %179, %182 : vector<1x2xf32>
    %184 = arith.mulf %183, %183 : vector<1x2xf32>
    %185 = vector.extract_strided_slice %165 {offsets = [1, 0], sizes = [1, 2], strides = [1, 1]} : vector<3x2xf32> to vector<1x2xf32>
    %186 = arith.mulf %144, %167 : vector<8x2xf32>
    %cst_69 = arith.constant dense<0.000000e+00> : vector<2xf32>
    %187 = vector.multi_reduction <add>, %186, %cst_69 [0] : vector<8x2xf32> to vector<2xf32>
    %188 = vector.shape_cast %187 : vector<2xf32> to vector<1x2xf32>
    %189 = arith.divf %185, %188 : vector<1x2xf32>
    %190 = arith.mulf %144, %170 : vector<8x2xf32>
    %cst_70 = arith.constant dense<0.000000e+00> : vector<2xf32>
    %191 = vector.multi_reduction <add>, %190, %cst_70 [0] : vector<8x2xf32> to vector<2xf32>
    %192 = vector.shape_cast %191 : vector<2xf32> to vector<1x2xf32>
    %193 = arith.subf %189, %192 : vector<1x2xf32>
    %194 = arith.mulf %193, %193 : vector<1x2xf32>
    %195 = arith.addf %184, %194 : vector<1x2xf32>
    %196 = vector.extract_strided_slice %165 {offsets = [2, 0], sizes = [1, 2], strides = [1, 1]} : vector<3x2xf32> to vector<1x2xf32>
    %197 = arith.mulf %144, %168 : vector<8x2xf32>
    %cst_71 = arith.constant dense<0.000000e+00> : vector<2xf32>
    %198 = vector.multi_reduction <add>, %197, %cst_71 [0] : vector<8x2xf32> to vector<2xf32>
    %199 = vector.shape_cast %198 : vector<2xf32> to vector<1x2xf32>
    %200 = arith.divf %196, %199 : vector<1x2xf32>
    %201 = arith.mulf %144, %171 : vector<8x2xf32>
    %cst_72 = arith.constant dense<0.000000e+00> : vector<2xf32>
    %202 = vector.multi_reduction <add>, %201, %cst_72 [0] : vector<8x2xf32> to vector<2xf32>
    %203 = vector.shape_cast %202 : vector<2xf32> to vector<1x2xf32>
    %204 = arith.subf %200, %203 : vector<1x2xf32>
    %205 = arith.mulf %204, %204 : vector<1x2xf32>
    %206 = arith.addf %195, %205 : vector<1x2xf32>
    %207 = math.sqrt %206 : vector<1x2xf32>
    %cst_73 = arith.constant 1.000000e+00 : f32
    %208 = vector.broadcast %cst_73 : f32 to vector<1x2xf32>
    %209 = arith.divf %207, %208 : vector<1x2xf32>
    %210 = math.absf %209 : vector<1x2xf32>
    %cst_74 = arith.constant 1.000000e+00 : f32
    %211 = vector.broadcast %cst_74 : f32 to vector<1x2xf32>
    %212 = arith.cmpf olt, %210, %211 : vector<1x2xf32>
    %cst_75 = arith.constant 5.000000e-01 : f32
    %213 = vector.broadcast %cst_75 : f32 to vector<1x2xf32>
    %214 = arith.mulf %213, %209 : vector<1x2xf32>
    %215 = arith.mulf %214, %209 : vector<1x2xf32>
    %cst_76 = arith.constant 5.000000e-01 : f32
    %216 = vector.broadcast %cst_76 : f32 to vector<1x2xf32>
    %217 = arith.subf %210, %216 : vector<1x2xf32>
    %218 = arith.select %212, %215, %217 : vector<1x2xi1>, vector<1x2xf32>
    %219 = vector.shape_cast %218 : vector<1x2xf32> to vector<1x1x2xf32>
    %cst_77 = arith.constant dense<0.000000e+00> : vector<1xf32>
    %220 = vector.multi_reduction <add>, %219, %cst_77 [1, 2] : vector<1x1x2xf32> to vector<1xf32>
    %221 = vector.shape_cast %220 : vector<1xf32> to vector<1x1x1xf32>
    %222 = vector.extract %221[0, 0, 0] : f32 from vector<1x1x1xf32>
    %223 = vector.broadcast %222 : f32 to vector<1x1xf32>
    %cst_78 = arith.constant 2.000000e+00 : f32
    %224 = vector.broadcast %cst_78 : f32 to vector<1x1xf32>
    %225 = arith.divf %223, %224 : vector<1x1xf32>
    %cst_79 = arith.constant 1.000000e+00 : f32
    %226 = vector.broadcast %cst_79 : f32 to vector<1x1xf32>
    %227 = arith.mulf %226, %225 : vector<1x1xf32>
    %c168 = arith.constant 168 : index
    %c0_80 = arith.constant 0 : index
    %228 = vector.load %arg3[%c168, %c0_80] : memref<224x2xf32, #tpu.memory_space<vmem>>, vector<12x2xf32>
    %c184 = arith.constant 184 : index
    %c0_81 = arith.constant 0 : index
    %229 = vector.load %arg3[%c184, %c0_81] : memref<224x2xf32, #tpu.memory_space<vmem>>, vector<8x2xf32>
    %c192 = arith.constant 192 : index
    %c0_82 = arith.constant 0 : index
    %230 = vector.load %arg3[%c192, %c0_82] : memref<224x2xf32, #tpu.memory_space<vmem>>, vector<8x2xf32>
    %c200 = arith.constant 200 : index
    %c0_83 = arith.constant 0 : index
    %231 = vector.load %arg3[%c200, %c0_83] : memref<224x2xf32, #tpu.memory_space<vmem>>, vector<8x2xf32>
    %c56 = arith.constant 56 : index
    %c0_84 = arith.constant 0 : index
    %232 = vector.load %arg3[%c56, %c0_84] : memref<224x2xf32, #tpu.memory_space<vmem>>, vector<12x2xf32>
    %233 = arith.addf %232, %228 : vector<12x2xf32>
    %234 = math.cos %233 : vector<12x2xf32>
    %235 = arith.mulf %87, %234 : vector<12x2xf32>
    %cst_85 = arith.constant dense<0.000000e+00> : vector<2xf32>
    %236 = vector.multi_reduction <add>, %235, %cst_85 [0] : vector<12x2xf32> to vector<2xf32>
    %237 = vector.shape_cast %236 : vector<2xf32> to vector<1x2xf32>
    %238 = math.sin %233 : vector<12x2xf32>
    %239 = arith.mulf %87, %238 : vector<12x2xf32>
    %cst_86 = arith.constant dense<0.000000e+00> : vector<2xf32>
    %240 = vector.multi_reduction <add>, %239, %cst_86 [0] : vector<12x2xf32> to vector<2xf32>
    %241 = vector.shape_cast %240 : vector<2xf32> to vector<1x2xf32>
    %cst_87 = arith.constant 2.000000e+00 : f32
    %242 = vector.broadcast %cst_87 : f32 to vector<8x2xf32>
    %243 = arith.mulf %242, %172 : vector<8x2xf32>
    %244 = arith.addf %166, %243 : vector<8x2xf32>
    %245 = arith.mulf %144, %244 : vector<8x2xf32>
    %cst_88 = arith.constant dense<0.000000e+00> : vector<2xf32>
    %246 = vector.multi_reduction <add>, %245, %cst_88 [0] : vector<8x2xf32> to vector<2xf32>
    %247 = vector.shape_cast %246 : vector<2xf32> to vector<1x2xf32>
    %cst_89 = arith.constant 2.000000e+00 : f32
    %248 = vector.broadcast %cst_89 : f32 to vector<8x2xf32>
    %249 = arith.mulf %248, %173 : vector<8x2xf32>
    %250 = arith.addf %167, %249 : vector<8x2xf32>
    %251 = arith.mulf %144, %250 : vector<8x2xf32>
    %cst_90 = arith.constant dense<0.000000e+00> : vector<2xf32>
    %252 = vector.multi_reduction <add>, %251, %cst_90 [0] : vector<8x2xf32> to vector<2xf32>
    %253 = vector.shape_cast %252 : vector<2xf32> to vector<1x2xf32>
    %cst_91 = arith.constant 2.000000e+00 : f32
    %254 = vector.broadcast %cst_91 : f32 to vector<8x2xf32>
    %255 = arith.mulf %254, %174 : vector<8x2xf32>
    %256 = arith.addf %168, %255 : vector<8x2xf32>
    %257 = arith.mulf %144, %256 : vector<8x2xf32>
    %cst_92 = arith.constant dense<0.000000e+00> : vector<2xf32>
    %258 = vector.multi_reduction <add>, %257, %cst_92 [0] : vector<8x2xf32> to vector<2xf32>
    %259 = vector.shape_cast %258 : vector<2xf32> to vector<1x2xf32>
    %260 = vector.broadcast %247 : vector<1x2xf32> to vector<8x2xf32>
    %261 = arith.mulf %229, %260 : vector<8x2xf32>
    %262 = vector.broadcast %259 : vector<1x2xf32> to vector<8x2xf32>
    %263 = arith.mulf %230, %262 : vector<8x2xf32>
    %264 = vector.broadcast %253 : vector<1x2xf32> to vector<8x2xf32>
    %265 = arith.mulf %231, %264 : vector<8x2xf32>
    %266 = vector.broadcast %237 : vector<1x2xf32> to vector<8x2xf32>
    %267 = arith.mulf %266, %261 : vector<8x2xf32>
    %268 = vector.broadcast %241 : vector<1x2xf32> to vector<8x2xf32>
    %269 = arith.mulf %268, %265 : vector<8x2xf32>
    %270 = arith.addf %267, %269 : vector<8x2xf32>
    %271 = vector.extract_strided_slice %27 {offsets = [0, 0], sizes = [1, 2], strides = [1, 1]} : vector<3x2xf32> to vector<1x2xf32>
    %272 = vector.broadcast %271 : vector<1x2xf32> to vector<8x2xf32>
    %273 = arith.addf %270, %272 : vector<8x2xf32>
    %274 = vector.extract_strided_slice %27 {offsets = [1, 0], sizes = [1, 2], strides = [1, 1]} : vector<3x2xf32> to vector<1x2xf32>
    %275 = vector.broadcast %274 : vector<1x2xf32> to vector<8x2xf32>
    %276 = arith.addf %263, %275 : vector<8x2xf32>
    %cst_93 = arith.constant 0.000000e+00 : f32
    %277 = vector.broadcast %cst_93 : f32 to vector<1x2xf32>
    %278 = arith.subf %277, %241 : vector<1x2xf32>
    %279 = vector.broadcast %278 : vector<1x2xf32> to vector<8x2xf32>
    %280 = arith.mulf %279, %261 : vector<8x2xf32>
    %281 = vector.broadcast %237 : vector<1x2xf32> to vector<8x2xf32>
    %282 = arith.mulf %281, %265 : vector<8x2xf32>
    %283 = arith.addf %280, %282 : vector<8x2xf32>
    %284 = vector.extract_strided_slice %27 {offsets = [2, 0], sizes = [1, 2], strides = [1, 1]} : vector<3x2xf32> to vector<1x2xf32>
    %285 = vector.broadcast %284 : vector<1x2xf32> to vector<8x2xf32>
    %286 = arith.addf %283, %285 : vector<8x2xf32>
    %287 = vector.broadcast %108 : vector<1x2xf32> to vector<12x2xf32>
    %288 = arith.addf %287, %228 : vector<12x2xf32>
    %289 = arith.mulf %87, %288 : vector<12x2xf32>
    %cst_94 = arith.constant dense<0.000000e+00> : vector<2xf32>
    %290 = vector.multi_reduction <add>, %289, %cst_94 [0] : vector<12x2xf32> to vector<2xf32>
    %291 = vector.shape_cast %290 : vector<2xf32> to vector<1x2xf32>
    %292 = vector.extract_strided_slice %165 {offsets = [0, 0], sizes = [1, 2], strides = [1, 1]} : vector<3x2xf32> to vector<1x2xf32>
    %293 = vector.broadcast %292 : vector<1x2xf32> to vector<8x2xf32>
    %294 = arith.addf %166, %293 : vector<8x2xf32>
    %295 = arith.mulf %144, %294 : vector<8x2xf32>
    %cst_95 = arith.constant dense<0.000000e+00> : vector<2xf32>
    %296 = vector.multi_reduction <add>, %295, %cst_95 [0] : vector<8x2xf32> to vector<2xf32>
    %297 = vector.shape_cast %296 : vector<2xf32> to vector<1x2xf32>
    %298 = vector.extract_strided_slice %165 {offsets = [1, 0], sizes = [1, 2], strides = [1, 1]} : vector<3x2xf32> to vector<1x2xf32>
    %299 = vector.broadcast %298 : vector<1x2xf32> to vector<8x2xf32>
    %300 = arith.addf %167, %299 : vector<8x2xf32>
    %301 = arith.mulf %144, %300 : vector<8x2xf32>
    %cst_96 = arith.constant dense<0.000000e+00> : vector<2xf32>
    %302 = vector.multi_reduction <add>, %301, %cst_96 [0] : vector<8x2xf32> to vector<2xf32>
    %303 = vector.shape_cast %302 : vector<2xf32> to vector<1x2xf32>
    %304 = vector.extract_strided_slice %165 {offsets = [2, 0], sizes = [1, 2], strides = [1, 1]} : vector<3x2xf32> to vector<1x2xf32>
    %305 = vector.broadcast %304 : vector<1x2xf32> to vector<8x2xf32>
    %306 = arith.addf %168, %305 : vector<8x2xf32>
    %307 = arith.mulf %144, %306 : vector<8x2xf32>
    %cst_97 = arith.constant dense<0.000000e+00> : vector<2xf32>
    %308 = vector.multi_reduction <add>, %307, %cst_97 [0] : vector<8x2xf32> to vector<2xf32>
    %309 = vector.shape_cast %308 : vector<2xf32> to vector<1x2xf32>
    %310 = vector.broadcast %297 : vector<1x2xf32> to vector<8x2xf32>
    %311 = arith.mulf %229, %310 : vector<8x2xf32>
    %312 = vector.broadcast %309 : vector<1x2xf32> to vector<8x2xf32>
    %313 = arith.mulf %230, %312 : vector<8x2xf32>
    %314 = vector.broadcast %303 : vector<1x2xf32> to vector<8x2xf32>
    %315 = arith.mulf %231, %314 : vector<8x2xf32>
    %316 = math.cos %291 : vector<1x2xf32>
    %317 = math.sin %291 : vector<1x2xf32>
    %318 = vector.broadcast %316 : vector<1x2xf32> to vector<8x2xf32>
    %319 = arith.mulf %318, %311 : vector<8x2xf32>
    %320 = vector.broadcast %317 : vector<1x2xf32> to vector<8x2xf32>
    %321 = arith.mulf %320, %315 : vector<8x2xf32>
    %322 = arith.addf %319, %321 : vector<8x2xf32>
    %cst_98 = arith.constant 0.000000e+00 : f32
    %323 = vector.broadcast %cst_98 : f32 to vector<1x2xf32>
    %324 = arith.subf %323, %317 : vector<1x2xf32>
    %325 = vector.broadcast %324 : vector<1x2xf32> to vector<8x2xf32>
    %326 = arith.mulf %325, %311 : vector<8x2xf32>
    %327 = vector.broadcast %316 : vector<1x2xf32> to vector<8x2xf32>
    %328 = arith.mulf %327, %315 : vector<8x2xf32>
    %329 = arith.addf %326, %328 : vector<8x2xf32>
    %330 = vector.extract_strided_slice %29 {offsets = [0, 0], sizes = [1, 2], strides = [1, 1]} : vector<3x2xf32> to vector<1x2xf32>
    %331 = vector.extract_strided_slice %29 {offsets = [2, 0], sizes = [1, 2], strides = [1, 1]} : vector<3x2xf32> to vector<1x2xf32>
    %332 = vector.extract_strided_slice %29 {offsets = [1, 0], sizes = [1, 2], strides = [1, 1]} : vector<3x2xf32> to vector<1x2xf32>
    %333 = vector.broadcast %332 : vector<1x2xf32> to vector<8x2xf32>
    %334 = arith.addf %313, %333 : vector<8x2xf32>
    %335 = arith.subf %276, %334 : vector<8x2xf32>
    %336 = arith.mulf %335, %335 : vector<8x2xf32>
    %337 = vector.broadcast %330 : vector<1x2xf32> to vector<8x2xf32>
    %338 = arith.addf %322, %337 : vector<8x2xf32>
    %339 = arith.subf %273, %338 : vector<8x2xf32>
    %340 = vector.broadcast %331 : vector<1x2xf32> to vector<8x2xf32>
    %341 = arith.addf %329, %340 : vector<8x2xf32>
    %342 = arith.subf %286, %341 : vector<8x2xf32>
    %343 = arith.mulf %339, %339 : vector<8x2xf32>
    %344 = arith.addf %343, %336 : vector<8x2xf32>
    %345 = arith.mulf %342, %342 : vector<8x2xf32>
    %346 = arith.addf %344, %345 : vector<8x2xf32>
    %347 = math.sqrt %346 : vector<8x2xf32>
    %348 = vector.broadcast %330 : vector<1x2xf32> to vector<8x2xf32>
    %349 = arith.subf %348, %322 : vector<8x2xf32>
    %350 = arith.subf %273, %349 : vector<8x2xf32>
    %351 = vector.broadcast %331 : vector<1x2xf32> to vector<8x2xf32>
    %352 = arith.subf %351, %329 : vector<8x2xf32>
    %353 = arith.subf %286, %352 : vector<8x2xf32>
    %354 = arith.mulf %350, %350 : vector<8x2xf32>
    %355 = arith.addf %354, %336 : vector<8x2xf32>
    %356 = arith.mulf %353, %353 : vector<8x2xf32>
    %357 = arith.addf %355, %356 : vector<8x2xf32>
    %358 = math.sqrt %357 : vector<8x2xf32>
    %359 = math.absf %347 : vector<8x2xf32>
    %cst_99 = arith.constant 1.000000e+00 : f32
    %360 = vector.broadcast %cst_99 : f32 to vector<8x2xf32>
    %361 = arith.cmpf olt, %359, %360 : vector<8x2xf32>
    %cst_100 = arith.constant 5.000000e-01 : f32
    %362 = vector.broadcast %cst_100 : f32 to vector<8x2xf32>
    %363 = arith.mulf %362, %347 : vector<8x2xf32>
    %364 = arith.mulf %363, %347 : vector<8x2xf32>
    %cst_101 = arith.constant 5.000000e-01 : f32
    %365 = vector.broadcast %cst_101 : f32 to vector<8x2xf32>
    %366 = arith.subf %359, %365 : vector<8x2xf32>
    %367 = arith.select %361, %364, %366 : vector<8x2xi1>, vector<8x2xf32>
    %cst_102 = arith.constant dense<0.000000e+00> : vector<2xf32>
    %368 = vector.multi_reduction <add>, %367, %cst_102 [0] : vector<8x2xf32> to vector<2xf32>
    %369 = vector.shape_cast %368 : vector<2xf32> to vector<1x2xf32>
    %cst_103 = arith.constant 8.000000e+00 : f32
    %370 = vector.broadcast %cst_103 : f32 to vector<1x2xf32>
    %371 = arith.divf %369, %370 : vector<1x2xf32>
    %372 = math.absf %358 : vector<8x2xf32>
    %cst_104 = arith.constant 1.000000e+00 : f32
    %373 = vector.broadcast %cst_104 : f32 to vector<8x2xf32>
    %374 = arith.cmpf olt, %372, %373 : vector<8x2xf32>
    %cst_105 = arith.constant 5.000000e-01 : f32
    %375 = vector.broadcast %cst_105 : f32 to vector<8x2xf32>
    %376 = arith.mulf %375, %358 : vector<8x2xf32>
    %377 = arith.mulf %376, %358 : vector<8x2xf32>
    %cst_106 = arith.constant 5.000000e-01 : f32
    %378 = vector.broadcast %cst_106 : f32 to vector<8x2xf32>
    %379 = arith.subf %372, %378 : vector<8x2xf32>
    %380 = arith.select %374, %377, %379 : vector<8x2xi1>, vector<8x2xf32>
    %cst_107 = arith.constant dense<0.000000e+00> : vector<2xf32>
    %381 = vector.multi_reduction <add>, %380, %cst_107 [0] : vector<8x2xf32> to vector<2xf32>
    %382 = vector.shape_cast %381 : vector<2xf32> to vector<1x2xf32>
    %cst_108 = arith.constant 8.000000e+00 : f32
    %383 = vector.broadcast %cst_108 : f32 to vector<1x2xf32>
    %384 = arith.divf %382, %383 : vector<1x2xf32>
    %385 = arith.minimumf %371, %384 : vector<1x2xf32>
    %386 = vector.shape_cast %385 : vector<1x2xf32> to vector<1x1x2xf32>
    %cst_109 = arith.constant dense<0.000000e+00> : vector<1xf32>
    %387 = vector.multi_reduction <add>, %386, %cst_109 [1, 2] : vector<1x1x2xf32> to vector<1xf32>
    %388 = vector.shape_cast %387 : vector<1xf32> to vector<1x1x1xf32>
    %389 = vector.extract %388[0, 0, 0] : f32 from vector<1x1x1xf32>
    %390 = vector.broadcast %389 : f32 to vector<1x1xf32>
    %cst_110 = arith.constant 2.000000e+00 : f32
    %391 = vector.broadcast %cst_110 : f32 to vector<1x1xf32>
    %392 = arith.divf %390, %391 : vector<1x1xf32>
    %393 = arith.addf %54, %107 : vector<1x1xf32>
    %394 = arith.addf %393, %164 : vector<1x1xf32>
    %cst_111 = arith.constant 2.000000e+01 : f32
    %395 = vector.broadcast %cst_111 : f32 to vector<1x1xf32>
    %396 = arith.mulf %136, %395 : vector<1x1xf32>
    %397 = arith.addf %394, %396 : vector<1x1xf32>
    %cst_112 = arith.constant 2.000000e+01 : f32
    %398 = vector.broadcast %cst_112 : f32 to vector<1x1xf32>
    %399 = arith.mulf %227, %398 : vector<1x1xf32>
    %400 = arith.addf %397, %399 : vector<1x1xf32>
    %401 = arith.addf %400, %79 : vector<1x1xf32>
    %cst_113 = arith.constant 1.000000e-03 : f32
    %402 = vector.broadcast %cst_113 : f32 to vector<1x1xf32>
    %403 = arith.mulf %402, %392 : vector<1x1xf32>
    %404 = arith.addf %401, %403 : vector<1x1xf32>
    %cst_114 = arith.constant 1.000000e+00 : f32
    %405 = vector.broadcast %cst_114 : f32 to vector<1x1xf32>
    %406 = arith.mulf %405, %404 : vector<1x1xf32>
    %407 = arith.addf %26, %406 : vector<1x1xf32>
    %c0_115 = arith.constant 0 : index
    %c0_116 = arith.constant 0 : index
    %408 = vector.load %arg4[%c0_115, %c0_116] : memref<1x1xf32, #tpu.memory_space<vmem>>, vector<1x1xf32>
    tpu.vector_store %arg4[%c0_115, %c0_116], %407 {strides = array<i32>} : memref<1x1xf32, #tpu.memory_space<vmem>>, vector<1x1xf32>,
    return
  }
}

</mosaic_0001>

<llo_original>
// kernel: tpu_custom_call.1
$region0: #{tpu_custom_call.1}
  #allocation0 [shape = 'u32[]', space=smem, size = 0x4, offset = 0x4, fixed_abs, tag = 'smem constant byte address 0x4 - core index']
  #allocation1 [shape = 'u32[144,128]{1,0:T(1,128)}', space=vmem, size = 0x12000, scoped, tag = 'internal scratch']
  %s0 = inlined_call_operand.vmem [shape: f32[2,128], index: 0, kind: input, shape index: {}]
  %s1 = inlined_call_operand.vmem [shape: f32[2,128], index: 1, kind: input, shape index: {}]
  %s2 = inlined_call_operand.vmem [shape: s32[2,128], index: 2, kind: input, shape index: {}]
  %s3 = inlined_call_operand.vmem [shape: f32[224,2], index: 3, kind: input, shape index: {}]
  %s4 = inlined_call_operand.hbm [shape: f32[1,1], index: 4, kind: output, shape index: {}]
  %s5 = sld [smem:[#allocation0]]
  $region26: #{tpu_custom_call.1} parent=0
    _
  %s7 = ssub.s32 1, %s5
  %s8 = scalar_select 0, %s7, %s5
  $region1: #{tpu_custom_call.1} parent=0
    #allocation2 [shape = 'u8[512]{0}', space=vmem, size = 0x400, scoped, tag = 'output window, operand 0, single buffered']
    #allocation3 [shape = 's32[1]{0}', space=sflag, size = 0x4, scoped, tag = 'scoped memory for tpu_custom_call.1']
    %9 = vsyncpa [#allocation3], 0
    // Predicated region
    $region2: #{tpu_custom_call.1} parent=1 // pred_check
      _
    $region3: #{tpu_custom_call.1} parent=1 // pred_check_branch
      %11 = sbr.rel (0) target = $region5
    $region4: #{tpu_custom_call.1} parent=1 // pred_region
      _
    $region5: #{tpu_custom_call.1} parent=1 // pred_fallthru
      _
    // Predicated region
    $region6: #{tpu_custom_call.1} parent=1 // pred_check
      _
    $region7: #{tpu_custom_call.1} parent=1 // pred_check_branch
      %13 = sbr.rel (0) target = $region9
    $region8: #{tpu_custom_call.1} parent=1 // pred_region
      _
    $region9: #{tpu_custom_call.1} parent=1 // pred_fallthru
      _
    // Predicated region
    $region10: #{tpu_custom_call.1} parent=1 // pred_check
      _
    $region11: #{tpu_custom_call.1} parent=1 // pred_check_branch
      %15 = sbr.rel (0) target = $region13
    $region12: #{tpu_custom_call.1} parent=1 // pred_region
      _
    $region13: #{tpu_custom_call.1} parent=1 // pred_fallthru
      _
    // Predicated region
    $region14: #{tpu_custom_call.1} parent=1 // pred_check
      _
    $region15: #{tpu_custom_call.1} parent=1 // pred_check_branch
      %17 = sbr.rel (0) target = $region17
    $region16: #{tpu_custom_call.1} parent=1 // pred_region
      _
    $region17: #{tpu_custom_call.1} parent=1 // pred_fallthru
      _
    %v18 = vld [vmem:[%s0] sm:$0x3]
    %v19 = vld [vmem:[%s1] sm:$0x3]
    %v20 = vld [vmem:[%s2] sm:$0x3]
    %v21 = vcvt.s32.f32 %v20
    %v22 = vsub.f32 %v19, %v18
    %v23 = vmul.f32 %v21, 2.0
    %v24 = vsub.f32 1.0, %v23
    %v25 = vmul.f32 %v22, %v24
    %v26 = vmax.f32 %v25, 0.0
    %v27 = vand.u32 2147483647, %v25
    %v28 = vsub.f32 0.0, %v27
    %v29 = vmul.f32 %v28, 1.442695
    %v30 = vpow.pop %v29
    %v31 = vadd.f32 %v30, 1.0
    %v32 = vlog2.pop %v31
    %v33 = vmul.f32 %v32, 0.6931472
    %v34 = vadd.f32 %v26, %v33
    %vm35 = vcmask 1041408
    %v36 = vsel %vm35, %v34, 0.0
    %37 = vadd.xlane.f32.xlu0 %v36
    %v38 = vpop.xlane.xlu0 %37
    %v39 = vrot.slane %v38, 4
    %v40 = vadd.f32 %v38, %v39
    %v41 = vrot.slane %v40, 2
    %v42 = vadd.f32 %v40, %v41
    %v43 = vrot.slane %v42, 1
    %v44 = vadd.f32 %v42, %v43
    %s45 = vtos %v44
    %v46 = vstv %s45
    %v47 = vrcp.pop 256.0
    %v48 = vmul.f32 %v46, %v47
    %v49 = vld [vmem:[%s3] sm:$0x7]
    %v50 = vld [vmem:[%s3 + $0x8] sm:$0x7]
    %v51 = vld [vmem:[%s3 + $0x10] sm:$0x7]
    %v52 = vsub.f32 %v51, %v49
    %v53 = vmul.f32 %v52, %v52
    %vm54 = vcmask 10240
    %v55 = vsel %vm54, %v53, 0.0
    %v56 = vrot.slane %v55, 4
    %v57 = vadd.f32 %v55, %v56
    %v58 = vrot.slane %v57, 2
    %v59 = vadd.f32 %v57, %v58
    %v60 = vrot.slane %v59, 1
    %v61 = vadd.f32 %v59, %v60
    %v62 = vrsqrt.pop %v61
    %v63 = vmul.f32 %v61, %v62
    %vm64 = vcmp.eq.f32.partialorder %v61, inf
    %v65 = vsel %vm64, %v61, %v63
    %vm66 = vcmp.eq.f32.partialorder %v61, 0.0
    %v67 = vand.u32 %v61, 2147483648
    %v68 = vsel %vm66, %v67, %v65
    %v69 = vrcp.pop 2.0
    %v70 = vmul.f32 %v68, %v69
    %v71 = vand.u32 2147483647, %v70
    %vm72 = vcmp.lt.f32.partialorder %v71, 1.0
    %v73 = vmul.f32 %v70, 0.5
    %v74 = vmul.f32 %v73, %v70
    %v75 = vsub.f32 %v71, 0.5
    %v76 = vsel %vm72, %v74, %v75
    %vm77 = vcmask 8192
    %v78 = vsel %vm77, %v76, 0.0
    %79 = vadd.xlane.f32.xlu0 %v78
    %v80 = vpop.xlane.xlu0 %79
    %v81 = vrot.slane %v80, 4
    %v82 = vadd.f32 %v80, %v81
    %v83 = vrot.slane %v82, 2
    %v84 = vadd.f32 %v82, %v83
    %v85 = vrot.slane %v84, 1
    %v86 = vadd.f32 %v84, %v85
    %s87 = vtos %v86
    %v88 = vstv %s87
    %v89 = vmul.f32 %v88, %v69
    %v90 = vmul.f32 %v89, 4.0
    %v91 = vsub.f32 %v51, %v50
    %v92 = vmul.f32 %v91, %v91
    %v93 = vsel %vm54, %v92, 0.0
    %v94 = vrot.slane %v93, 4
    %v95 = vadd.f32 %v93, %v94
    %v96 = vrot.slane %v95, 2
    %v97 = vadd.f32 %v95, %v96
    %v98 = vrot.slane %v97, 1
    %v99 = vadd.f32 %v97, %v98
    %v100 = vrsqrt.pop %v99
    %v101 = vmul.f32 %v99, %v100
    %vm102 = vcmp.eq.f32.partialorder %v99, inf
    %v103 = vsel %vm102, %v99, %v101
    %vm104 = vcmp.eq.f32.partialorder %v99, 0.0
    %v105 = vand.u32 %v99, 2147483648
    %v106 = vsel %vm104, %v105, %v103
    %v107 = vand.u32 2147483647, %v106
    %vm108 = vcmp.lt.f32.partialorder %v107, 1.0
    %v109 = vmul.f32 %v106, 0.5
    %v110 = vmul.f32 %v109, %v106
    %v111 = vsub.f32 %v107, 0.5
    %v112 = vsel %vm108, %v110, %v111
    %v113 = vsel %vm77, %v112, 0.0
    %114 = vadd.xlane.f32.xlu0 %v113
    %v115 = vpop.xlane.xlu0 %114
    %v116 = vrot.slane %v115, 4
    %v117 = vadd.f32 %v115, %v116
    %v118 = vrot.slane %v117, 2
    %v119 = vadd.f32 %v117, %v118
    %v120 = vrot.slane %v119, 1
    %v121 = vadd.f32 %v119, %v120
    %s122 = vtos %v121
    %v123 = vstv %s122
    %v124 = vmul.f32 %v123, %v69
    %v125 = vld [vmem:[%s3 + $0x18] sm:$0xff]
    %v126 = vld [vmem:[%s3 + $0x20] sm:$0xf]
    %v127 = vld [vmem:[%s3 + $0xd0] sm:$0x1]
    %v128 = vlaneseq
    %v129 = vshrl.u32 %v128, 7
    %v130 = vadd.s32 %v129, 8
    %v131 = vcvt.s32.f32 %v129
    %v132 = vcvt.s32.f32 %v130
    %v133 = vlaneseq
    %v134 = vshrl.u32 %v133, 7
    %v135 = vsub.s32 0, %v134
    %v136 = vrot.slane %v127, %v135
    %vm137 = vcmp.eq.f32.partialorder %v131, %v136
    %vm138 = vcmp.eq.f32.partialorder %v132, %v136
    %v139 = vsel %vm137, 1, 0
    %v140 = vsel %vm138, 1, 0
    %v141 = vcvt.s32.f32 %v139
    %v142 = vcvt.s32.f32 %v140
    %vm143 = vcmask 15360
    %v144 = vsel %vm143, %v125, -inf
    %vm145 = vcmask 11264
    %v146 = vsel %vm145, %v126, -inf
    %v147 = vmax.f32 %v144, %v146
    %v148 = vrot.slane %v147, 4
    %v149 = vmax.f32 %v147, %v148
    %v150 = vrot.slane %v149, 2
    %v151 = vmax.f32 %v149, %v150
    %v152 = vrot.slane %v151, 1
    %v153 = vmax.f32 %v151, %v152
    %v154 = vsub.f32 %v125, %v153
    %v155 = vsub.f32 %v126, %v153
    %v156 = vmul.f32 %v154, 1.442695
    %v157 = vpow.pop %v156
    %v158 = vmul.f32 %v155, 1.442695
    %v159 = vpow.pop %v158
    %v160 = vsel %vm143, %v157, 0.0
    %v161 = vsel %vm145, %v159, 0.0
    %v162 = vadd.f32 %v160, %v161
    %v163 = vrot.slane %v162, 4
    %v164 = vadd.f32 %v162, %v163
    %v165 = vrot.slane %v164, 2
    %v166 = vadd.f32 %v164, %v165
    %v167 = vrot.slane %v166, 1
    %v168 = vadd.f32 %v166, %v167
    %v169 = vlog2.pop %v168
    %v170 = vmul.f32 %v169, 0.6931472
    %v171 = vadd.f32 %v153, %v170
    %v172 = vmul.f32 %v141, %v125
    %v173 = vmul.f32 %v142, %v126
    %v174 = vsel %vm143, %v172, 0.0
    %v175 = vsel %vm145, %v173, 0.0
    %v176 = vadd.f32 %v174, %v175
    %v177 = vrot.slane %v176, 4
    %v178 = vadd.f32 %v176, %v177
    %v179 = vrot.slane %v178, 2
    %v180 = vadd.f32 %v178, %v179
    %v181 = vrot.slane %v180, 1
    %v182 = vadd.f32 %v180, %v181
    %v183 = vsub.f32 %v171, %v182
    %v184 = vsel %vm77, %v183, 0.0
    %185 = vadd.xlane.f32.xlu0 %v184
    %v186 = vpop.xlane.xlu0 %185
    %v187 = vrot.slane %v186, 4
    %v188 = vadd.f32 %v186, %v187
    %v189 = vrot.slane %v188, 2
    %v190 = vadd.f32 %v188, %v189
    %v191 = vrot.slane %v190, 1
    %v192 = vadd.f32 %v190, %v191
    %s193 = vtos %v192
    %v194 = vstv %s193
    %v195 = vmul.f32 %v194, %v69
    %v196 = vld [vmem:[%s3 + $0x48] sm:$0x1]
    %v197 = vld [vmem:[%s3 + $0x28] sm:$0xff]
    %v198 = vld [vmem:[%s3 + $0x30] sm:$0xf]
    %v199 = vmul.f32 %v141, %v197
    %v200 = vmul.f32 %v142, %v198
    %v201 = vsel %vm143, %v199, 0.0
    %v202 = vsel %vm145, %v200, 0.0
    %v203 = vadd.f32 %v201, %v202
    %v204 = vrot.slane %v203, 4
    %v205 = vadd.f32 %v203, %v204
    %v206 = vrot.slane %v205, 2
    %v207 = vadd.f32 %v205, %v206
    %v208 = vrot.slane %v207, 1
    %v209 = vadd.f32 %v207, %v208
    %v210 = vrcp.pop 0.2617994
    %v211 = vmul.f32 %v196, %v210
    %v212 = vsub.f32 %v209, %v211
    %v213 = vand.u32 2147483647, %v212
    %vm214 = vcmp.lt.f32.partialorder %v213, 1.0
    %v215 = vmul.f32 %v212, 0.5
    %v216 = vmul.f32 %v215, %v212
    %v217 = vsub.f32 %v213, 0.5
    %v218 = vsel %vm214, %v216, %v217
    %v219 = vsel %vm77, %v218, 0.0
    %220 = vadd.xlane.f32.xlu0 %v219
    %v221 = vpop.xlane.xlu0 %220
    %v222 = vrot.slane %v221, 4
    %v223 = vadd.f32 %v221, %v222
    %v224 = vrot.slane %v223, 2
    %v225 = vadd.f32 %v223, %v224
    %v226 = vrot.slane %v225, 1
    %v227 = vadd.f32 %v225, %v226
    %s228 = vtos %v227
    %v229 = vstv %s228
    %v230 = vmul.f32 %v229, %v69
    %v231 = vld [vmem:[%s3 + $0x50] sm:$0xff]
    %v232 = vld [vmem:[%s3 + $0xd8] sm:$0x1]
    %v233 = vlaneseq
    %v234 = vshrl.u32 %v233, 7
    %v235 = vsub.s32 0, %v234
    %v236 = vrot.slane %v232, %v235
    %vm237 = vcmp.eq.f32.partialorder %v131, %v236
    %v238 = vsel %vm237, 1, 0
    %v239 = vcvt.s32.f32 %v238
    %v240 = vsel %vm143, %v231, -inf
    %v241 = vrot.slane %v240, 4
    %v242 = vmax.f32 %v240, %v241
    %v243 = vrot.slane %v242, 2
    %v244 = vmax.f32 %v242, %v243
    %v245 = vrot.slane %v244, 1
    %v246 = vmax.f32 %v244, %v245
    %v247 = vsub.f32 %v231, %v246
    %v248 = vmul.f32 %v247, 1.442695
    %v249 = vpow.pop %v248
    %v250 = vsel %vm143, %v249, 0.0
    %v251 = vrot.slane %v250, 4
    %v252 = vadd.f32 %v250, %v251
    %v253 = vrot.slane %v252, 2
    %v254 = vadd.f32 %v252, %v253
    %v255 = vrot.slane %v254, 1
    %v256 = vadd.f32 %v254, %v255
    %v257 = vlog2.pop %v256
    %v258 = vmul.f32 %v257, 0.6931472
    %v259 = vadd.f32 %v246, %v258
    %v260 = vmul.f32 %v239, %v231
    %v261 = vsel %vm143, %v260, 0.0
    %v262 = vrot.slane %v261, 4
    %v263 = vadd.f32 %v261, %v262
    %v264 = vrot.slane %v263, 2
    %v265 = vadd.f32 %v263, %v264
    %v266 = vrot.slane %v265, 1
    %v267 = vadd.f32 %v265, %v266
    %v268 = vsub.f32 %v259, %v267
    %v269 = vsel %vm77, %v268, 0.0
    %270 = vadd.xlane.f32.xlu0 %v269
    %v271 = vpop.xlane.xlu0 %270
    %v272 = vrot.slane %v271, 4
    %v273 = vadd.f32 %v271, %v272
    %v274 = vrot.slane %v273, 2
    %v275 = vadd.f32 %v273, %v274
    %v276 = vrot.slane %v275, 1
    %v277 = vadd.f32 %v275, %v276
    %s278 = vtos %v277
    %v279 = vstv %s278
    %v280 = vmul.f32 %v279, %v69
    %v281 = vld [vmem:[%s3 + $0x88] sm:$0x7]
    %v282 = vld [vmem:[%s3 + $0x90] sm:$0xff]
    %v283 = vld [vmem:[%s3 + $0x98] sm:$0xff]
    %v284 = vld [vmem:[%s3 + $0xa0] sm:$0xff]
    %v285 = vld [vmem:[%s3 + $0x58] sm:$0xff]
    %v286 = vld [vmem:[%s3 + $0x60] sm:$0xff]
    %v287 = vld [vmem:[%s3 + $0x68] sm:$0xff]
    %v288 = vld [vmem:[%s3 + $0x70] sm:$0xff]
    %v289 = vld [vmem:[%s3 + $0x78] sm:$0xff]
    %v290 = vld [vmem:[%s3 + $0x80] sm:$0xff]
    %v291 = vmul.f32 %v239, %v282
    %v292 = vsel %vm143, %v291, 0.0
    %v293 = vrot.slane %v292, 4
    %v294 = vadd.f32 %v292, %v293
    %v295 = vrot.slane %v294, 2
    %v296 = vadd.f32 %v294, %v295
    %v297 = vrot.slane %v296, 1
    %v298 = vadd.f32 %v296, %v297
    %v299 = vrcp.pop %v298
    %v300 = vmul.f32 %v281, %v299
    %v301 = vmul.f32 %v239, %v285
    %v302 = vsel %vm143, %v301, 0.0
    %v303 = vrot.slane %v302, 4
    %v304 = vadd.f32 %v302, %v303
    %v305 = vrot.slane %v304, 2
    %v306 = vadd.f32 %v304, %v305
    %v307 = vrot.slane %v306, 1
    %v308 = vadd.f32 %v306, %v307
    %v309 = vsub.f32 %v300, %v308
    %v310 = vmul.f32 %v309, %v309
    %v311 = vmul.f32 %v239, %v283
    %v312 = vsel %vm143, %v311, 0.0
    %v313 = vrot.slane %v312, 4
    %v314 = vadd.f32 %v312, %v313
    %v315 = vrot.slane %v314, 2
    %v316 = vadd.f32 %v314, %v315
    %v317 = vrot.slane %v316, 1
    %v318 = vadd.f32 %v316, %v317
    %v319 = vrcp.pop %v318
    %v320 = vmul.f32 %v281, %v319
    %v321 = vmul.f32 %v239, %v286
    %v322 = vsel %vm143, %v321, 0.0
    %v323 = vrot.slane %v322, 4
    %v324 = vadd.f32 %v322, %v323
    %v325 = vrot.slane %v324, 2
    %v326 = vadd.f32 %v324, %v325
    %v327 = vrot.slane %v326, 1
    %v328 = vadd.f32 %v326, %v327
    %v329 = vsub.f32 %v320, %v328
    %v330 = vmul.f32 %v329, %v329
    %v332 = vrot.slane %v330, 1
    %v334 = vadd.f32 %v310, %v332
    %v335 = vmul.f32 %v239, %v284
    %v336 = vsel %vm143, %v335, 0.0
    %v337 = vrot.slane %v336, 4
    %v338 = vadd.f32 %v336, %v337
    %v339 = vrot.slane %v338, 2
    %v340 = vadd.f32 %v338, %v339
    %v341 = vrot.slane %v340, 1
    %v342 = vadd.f32 %v340, %v341
    %v343 = vrcp.pop %v342
    %v344 = vmul.f32 %v281, %v343
    %v345 = vmul.f32 %v239, %v287
    %v346 = vsel %vm143, %v345, 0.0
    %v347 = vrot.slane %v346, 4
    %v348 = vadd.f32 %v346, %v347
    %v349 = vrot.slane %v348, 2
    %v350 = vadd.f32 %v348, %v349
    %v351 = vrot.slane %v350, 1
    %v352 = vadd.f32 %v350, %v351
    %v353 = vsub.f32 %v344, %v352
    %v354 = vmul.f32 %v353, %v353
    %v356 = vrot.slane %v354, 2
    %v358 = vadd.f32 %v334, %v356
    %v359 = vrsqrt.pop %v358
    %v360 = vmul.f32 %v358, %v359
    %vm361 = vcmp.eq.f32.partialorder %v358, inf
    %v362 = vsel %vm361, %v358, %v360
    %vm363 = vcmp.eq.f32.partialorder %v358, 0.0
    %v364 = vand.u32 %v358, 2147483648
    %v365 = vsel %vm363, %v364, %v362
    %v366 = vand.u32 2147483647, %v365
    %vm367 = vcmp.lt.f32.partialorder %v366, 1.0
    %v368 = vmul.f32 %v365, 0.5
    %v369 = vmul.f32 %v368, %v365
    %v370 = vsub.f32 %v366, 0.5
    %v371 = vsel %vm367, %v369, %v370
    %v372 = vsel %vm77, %v371, 0.0
    %373 = vadd.xlane.f32.xlu0 %v372
    %v374 = vpop.xlane.xlu0 %373
    %v375 = vrot.slane %v374, 4
    %v376 = vadd.f32 %v374, %v375
    %v377 = vrot.slane %v376, 2
    %v378 = vadd.f32 %v376, %v377
    %v379 = vrot.slane %v378, 1
    %v380 = vadd.f32 %v378, %v379
    %s381 = vtos %v380
    %v382 = vstv %s381
    %v383 = vmul.f32 %v382, %v69
    %v384 = vld [vmem:[%s3 + $0xa8] sm:$0xff]
    %v385 = vld [vmem:[%s3 + $0xb0] sm:$0xf]
    %v386 = vld [vmem:[%s3 + $0xb8] sm:$0xff]
    %v387 = vld [vmem:[%s3 + $0xc0] sm:$0xff]
    %v388 = vld [vmem:[%s3 + $0xc8] sm:$0xff]
    %v389 = vld [vmem:[%s3 + $0x38] sm:$0xff]
    %v390 = vld [vmem:[%s3 + $0x40] sm:$0xf]
    %v391 = vadd.f32 %v389, %v384
    %v392 = vadd.f32 %v390, %v385
    %v393 = vand.u32 2147483647, %v391
    %vm394 = vcmp.le.f32.partialorder %v393, 0.7853982
    %vm395 = vcmp.lt.s32.totalorder %v391, 0
    %v396 = vand.u32 %v391, 2139095040
    %v397 = vshrl.u32 %v396, 23
    %v398 = vsub.s32 %v397, 127
    %v399 = vand.u32 2147483647, %v391
    %v400 = vand.u32 %v399, 8388607
    %v401 = vor.u32 %v400, 8388608
    %v402 = vsub.s32 0, %v401
    %v403 = vadd.s32 %v398, 1
    %vm404 = vcmp.gt.s32.totalorder %v403, 0
    %v405 = vsel %vm404, %v403, 0
    %v406 = vshrl.u32 %v405, 5
    %v407 = vand.u32 %v405, 31
    %v408 = vsub.s32 32, %v407
    %v409 = vshrl.u32 683565275, %v408
    %v410 = vshll.u32 683565275, %v407
    %v411 = vshrl.u32 2475754826, %v408
    %v412 = vor.u32 %v410, %v411
    %v413 = vshll.u32 2475754826, %v407
    %v414 = vshrl.u32 2131351028, %v408
    %v415 = vor.u32 %v413, %v414
    %v416 = vshll.u32 2131351028, %v407
    %v417 = vshrl.u32 2102212464, %v408
    %v418 = vor.u32 %v416, %v417
    %v419 = vshll.u32 2102212464, %v407
    %v420 = vshrl.u32 920167782, %v408
    %v421 = vor.u32 %v419, %v420
    %v422 = vshll.u32 920167782, %v407
    %v423 = vshrl.u32 1326507024, %v408
    %v424 = vor.u32 %v422, %v423
    %vm425 = vcmp.lt.s32.totalorder %v406, 1
    %vm426 = vcmp.lt.s32.totalorder %v406, 2
    %vm427 = vcmp.lt.s32.totalorder %v406, 3
    %vm428 = vcmp.lt.s32.totalorder %v406, 4
    %v429 = vsel %vm425, %v409, %v412
    %v430 = vsel %vm428, %v418, 2102212464
    %v431 = vsel %vm427, %v415, %v430
    %v432 = vsel %vm426, %v429, %v431
    %v433 = vsel %vm425, %v412, %v415
    %v434 = vsel %vm428, %v421, 920167782
    %v435 = vsel %vm427, %v418, %v434
    %v436 = vsel %vm426, %v433, %v435
    %v437 = vsel %vm425, %v415, %v418
    %v438 = vsel %vm428, %v424, 1326507024
    %v439 = vsel %vm427, %v421, %v438
    %v440 = vsel %vm426, %v437, %v439
    %v441 = vshll.u32 %v401, 8
    %v442 = vmul.u32.u64.compose %v441, %v440
    %v443 = vextract.low.u32 %v442
    %v444 = vextract.high.u32 %v442
    %v445 = vmul.u32.u64.compose %v441, %v436
    %v446 = vextract.low.u32 %v445
    %v447 = vextract.high.u32 %v445
    %v448 = vmul.u32 %v441, %v432
    %v449 = vadd.s32 %v444, %v446
    %vm450 = vc.u32 %v444, %v446
    %v451 = vadd.s32 %v447, 1
    %v452 = vsel %vm450, %v451, %v447
    %v453 = vadd.s32 %v448, %v452
    %v454 = vadd.s32 %v453, 536870912
    %v455 = vshrl.u32 %v454, 30
    %v456 = vshll.u32 %v455, 30
    %v457 = vsub.s32 %v453, %v456
    %vm458 = vcmp.lt.s32.totalorder %v457, 0
    %v459 = vsub.s32 0, %v457
    %v460 = vsel %vm458, %v459, %v457
    %v461 = vclz %v460
    %v462 = vsub.s32 %v461, 2
    %vm463 = vcmp.gt.s32.totalorder 0, %v462
    %v464 = vsel %vm463, 0, %v462
    %v465 = vsub.s32 32, %v464
    %v466 = vshll.u32 %v457, %v464
    %v467 = vshrl.u32 %v449, %v465
    %v468 = vor.u32 %v466, %v467
    %v469 = vsub.s32 4294967266, %v464
    %v470 = vadd.s32 %v469, 127
    %v471 = vshll.u32 %v470, 23
    %v472 = vor.u32 4788187, %v471
    %v473 = vand.u32 2147483647, %v472
    %v475 = vcvt.s32.f32 %v468
    %v476 = vmul.f32 %v475, %v473
    %v477 = vxor.u32 %v476, 2147483648
    %v478 = vsel %vm395, %v477, %v476
    %v479 = vsub.s32 4, %v455
    %v480 = vsel %vm395, %v479, %v455
    %v481 = vsel %vm394, %v391, %v478
    %v482 = vsel %vm394, 0, %v480
    %v483 = vcosq.f32.pop %v481
    %v484 = vsinq.f32.pop %v481
    %vm485 = vweird.f32 %v391
    %v486 = vand.u32 %v482, 3
    %vm487 = vcmp.lt.s32.totalorder %v486, 2
    %vm488 = vcmp.eq.s32.totalorder %v486, 0
    %v489 = vxor.u32 %v484, 2147483648
    %v490 = vsel %vm488, %v483, %v489
    %vm491 = vcmp.eq.s32.totalorder %v486, 2
    %v492 = vxor.u32 %v483, 2147483648
    %v493 = vsel %vm491, %v492, %v484
    %v494 = vsel %vm487, %v490, %v493
    %v495 = vsel %vm485, nan, %v494
    %v496 = vand.u32 2147483647, %v392
    %vm497 = vcmp.le.f32.partialorder %v496, 0.7853982
    %vm498 = vcmp.lt.s32.totalorder %v392, 0
    %v499 = vand.u32 %v392, 2139095040
    %v500 = vshrl.u32 %v499, 23
    %v501 = vsub.s32 %v500, 127
    %v502 = vand.u32 2147483647, %v392
    %v503 = vand.u32 %v502, 8388607
    %v504 = vor.u32 %v503, 8388608
    %v505 = vsub.s32 0, %v504
    %v506 = vadd.s32 %v501, 1
    %vm507 = vcmp.gt.s32.totalorder %v506, 0
    %v508 = vsel %vm507, %v506, 0
    %v509 = vshrl.u32 %v508, 5
    %v510 = vand.u32 %v508, 31
    %v511 = vsub.s32 32, %v510
    %v512 = vshrl.u32 683565275, %v511
    %v513 = vshll.u32 683565275, %v510
    %v514 = vshrl.u32 2475754826, %v511
    %v515 = vor.u32 %v513, %v514
    %v516 = vshll.u32 2475754826, %v510
    %v517 = vshrl.u32 2131351028, %v511
    %v518 = vor.u32 %v516, %v517
    %v519 = vshll.u32 2131351028, %v510
    %v520 = vshrl.u32 2102212464, %v511
    %v521 = vor.u32 %v519, %v520
    %v522 = vshll.u32 2102212464, %v510
    %v523 = vshrl.u32 920167782, %v511
    %v524 = vor.u32 %v522, %v523
    %v525 = vshll.u32 920167782, %v510
    %v526 = vshrl.u32 1326507024, %v511
    %v527 = vor.u32 %v525, %v526
    %vm528 = vcmp.lt.s32.totalorder %v509, 1
    %vm529 = vcmp.lt.s32.totalorder %v509, 2
    %vm530 = vcmp.lt.s32.totalorder %v509, 3
    %vm531 = vcmp.lt.s32.totalorder %v509, 4
    %v532 = vsel %vm528, %v512, %v515
    %v533 = vsel %vm531, %v521, 2102212464
    %v534 = vsel %vm530, %v518, %v533
    %v535 = vsel %vm529, %v532, %v534
    %v536 = vsel %vm528, %v515, %v518
    %v537 = vsel %vm531, %v524, 920167782
    %v538 = vsel %vm530, %v521, %v537
    %v539 = vsel %vm529, %v536, %v538
    %v540 = vsel %vm528, %v518, %v521
    %v541 = vsel %vm531, %v527, 1326507024
    %v542 = vsel %vm530, %v524, %v541
    %v543 = vsel %vm529, %v540, %v542
    %v544 = vshll.u32 %v504, 8
    %v545 = vmul.u32.u64.compose %v544, %v543
    %v546 = vextract.low.u32 %v545
    %v547 = vextract.high.u32 %v545
    %v548 = vmul.u32.u64.compose %v544, %v539
    %v549 = vextract.low.u32 %v548
    %v550 = vextract.high.u32 %v548
    %v551 = vmul.u32 %v544, %v535
    %v552 = vadd.s32 %v547, %v549
    %vm553 = vc.u32 %v547, %v549
    %v554 = vadd.s32 %v550, 1
    %v555 = vsel %vm553, %v554, %v550
    %v556 = vadd.s32 %v551, %v555
    %v557 = vadd.s32 %v556, 536870912
    %v558 = vshrl.u32 %v557, 30
    %v559 = vshll.u32 %v558, 30
    %v560 = vsub.s32 %v556, %v559
    %vm561 = vcmp.lt.s32.totalorder %v560, 0
    %v562 = vsub.s32 0, %v560
    %v563 = vsel %vm561, %v562, %v560
    %v564 = vclz %v563
    %v565 = vsub.s32 %v564, 2
    %vm566 = vcmp.gt.s32.totalorder 0, %v565
    %v567 = vsel %vm566, 0, %v565
    %v568 = vsub.s32 32, %v567
    %v569 = vshll.u32 %v560, %v567
    %v570 = vshrl.u32 %v552, %v568
    %v571 = vor.u32 %v569, %v570
    %v572 = vsub.s32 4294967266, %v567
    %v573 = vadd.s32 %v572, 127
    %v574 = vshll.u32 %v573, 23
    %v575 = vor.u32 4788187, %v574
    %v576 = vand.u32 2147483647, %v575
    %v578 = vcvt.s32.f32 %v571
    %v579 = vmul.f32 %v578, %v576
    %v580 = vxor.u32 %v579, 2147483648
    %v581 = vsel %vm498, %v580, %v579
    %v582 = vsub.s32 4, %v558
    %v583 = vsel %vm498, %v582, %v558
    %v584 = vsel %vm497, %v392, %v581
    %v585 = vsel %vm497, 0, %v583
    %v586 = vcosq.f32.pop %v584
    %v587 = vsinq.f32.pop %v584
    %vm588 = vweird.f32 %v392
    %v589 = vand.u32 %v585, 3
    %vm590 = vcmp.lt.s32.totalorder %v589, 2
    %vm591 = vcmp.eq.s32.totalorder %v589, 0
    %v592 = vxor.u32 %v587, 2147483648
    %v593 = vsel %vm591, %v586, %v592
    %vm594 = vcmp.eq.s32.totalorder %v589, 2
    %v595 = vxor.u32 %v586, 2147483648
    %v596 = vsel %vm594, %v595, %v587
    %v597 = vsel %vm590, %v593, %v596
    %v598 = vsel %vm588, nan, %v597
    %v599 = vmul.f32 %v141, %v495
    %v600 = vmul.f32 %v142, %v598
    %v601 = vsel %vm143, %v599, 0.0
    %v602 = vsel %vm145, %v600, 0.0
    %v603 = vadd.f32 %v601, %v602
    %v604 = vrot.slane %v603, 4
    %v605 = vadd.f32 %v603, %v604
    %v606 = vrot.slane %v605, 2
    %v607 = vadd.f32 %v605, %v606
    %v608 = vrot.slane %v607, 1
    %v609 = vadd.f32 %v607, %v608
    %v610 = vand.u32 2147483647, %v391
    %vm611 = vcmp.le.f32.partialorder %v610, 0.7853982
    %vm612 = vcmp.lt.s32.totalorder %v391, 0
    %v613 = vand.u32 %v391, 2139095040
    %v614 = vshrl.u32 %v613, 23
    %v615 = vsub.s32 %v614, 127
    %v616 = vand.u32 2147483647, %v391
    %v617 = vand.u32 %v616, 8388607
    %v618 = vor.u32 %v617, 8388608
    %v619 = vsub.s32 0, %v618
    %v620 = vadd.s32 %v615, 1
    %vm621 = vcmp.gt.s32.totalorder %v620, 0
    %v622 = vsel %vm621, %v620, 0
    %v623 = vshrl.u32 %v622, 5
    %v624 = vand.u32 %v622, 31
    %v625 = vsub.s32 32, %v624
    %v626 = vshrl.u32 683565275, %v625
    %v627 = vshll.u32 683565275, %v624
    %v628 = vshrl.u32 2475754826, %v625
    %v629 = vor.u32 %v627, %v628
    %v630 = vshll.u32 2475754826, %v624
    %v631 = vshrl.u32 2131351028, %v625
    %v632 = vor.u32 %v630, %v631
    %v633 = vshll.u32 2131351028, %v624
    %v634 = vshrl.u32 2102212464, %v625
    %v635 = vor.u32 %v633, %v634
    %v636 = vshll.u32 2102212464, %v624
    %v637 = vshrl.u32 920167782, %v625
    %v638 = vor.u32 %v636, %v637
    %v639 = vshll.u32 920167782, %v624
    %v640 = vshrl.u32 1326507024, %v625
    %v641 = vor.u32 %v639, %v640
    %vm642 = vcmp.lt.s32.totalorder %v623, 1
    %vm643 = vcmp.lt.s32.totalorder %v623, 2
    %vm644 = vcmp.lt.s32.totalorder %v623, 3
    %vm645 = vcmp.lt.s32.totalorder %v623, 4
    %v646 = vsel %vm642, %v626, %v629
    %v647 = vsel %vm645, %v635, 2102212464
    %v648 = vsel %vm644, %v632, %v647
    %v649 = vsel %vm643, %v646, %v648
    %v650 = vsel %vm642, %v629, %v632
    %v651 = vsel %vm645, %v638, 920167782
    %v652 = vsel %vm644, %v635, %v651
    %v653 = vsel %vm643, %v650, %v652
    %v654 = vsel %vm642, %v632, %v635
    %v655 = vsel %vm645, %v641, 1326507024
    %v656 = vsel %vm644, %v638, %v655
    %v657 = vsel %vm643, %v654, %v656
    %v658 = vshll.u32 %v618, 8
    %v659 = vmul.u32.u64.compose %v658, %v657
    %v660 = vextract.low.u32 %v659
    %v661 = vextract.high.u32 %v659
    %v662 = vmul.u32.u64.compose %v658, %v653
    %v663 = vextract.low.u32 %v662
    %v664 = vextract.high.u32 %v662
    %v665 = vmul.u32 %v658, %v649
    %v666 = vadd.s32 %v661, %v663
    %vm667 = vc.u32 %v661, %v663
    %v668 = vadd.s32 %v664, 1
    %v669 = vsel %vm667, %v668, %v664
    %v670 = vadd.s32 %v665, %v669
    %v671 = vadd.s32 %v670, 536870912
    %v672 = vshrl.u32 %v671, 30
    %v673 = vshll.u32 %v672, 30
    %v674 = vsub.s32 %v670, %v673
    %vm675 = vcmp.lt.s32.totalorder %v674, 0
    %v676 = vsub.s32 0, %v674
    %v677 = vsel %vm675, %v676, %v674
    %v678 = vclz %v677
    %v679 = vsub.s32 %v678, 2
    %vm680 = vcmp.gt.s32.totalorder 0, %v679
    %v681 = vsel %vm680, 0, %v679
    %v682 = vsub.s32 32, %v681
    %v683 = vshll.u32 %v674, %v681
    %v684 = vshrl.u32 %v666, %v682
    %v685 = vor.u32 %v683, %v684
    %v686 = vsub.s32 4294967266, %v681
    %v687 = vadd.s32 %v686, 127
    %v688 = vshll.u32 %v687, 23
    %v689 = vor.u32 4788187, %v688
    %v690 = vand.u32 2147483647, %v689
    %v692 = vcvt.s32.f32 %v685
    %v693 = vmul.f32 %v692, %v690
    %v694 = vxor.u32 %v693, 2147483648
    %v695 = vsel %vm612, %v694, %v693
    %v696 = vsub.s32 4, %v672
    %v697 = vsel %vm612, %v696, %v672
    %v698 = vsel %vm611, %v391, %v695
    %v699 = vsel %vm611, 0, %v697
    %v700 = vcosq.f32.pop %v698
    %v701 = vsinq.f32.pop %v698
    %vm702 = vweird.f32 %v391
    %v703 = vadd.s32 %v699, 3
    %v704 = vand.u32 %v703, 3
    %vm705 = vcmp.lt.s32.totalorder %v704, 2
    %vm706 = vcmp.eq.s32.totalorder %v704, 0
    %v707 = vxor.u32 %v701, 2147483648
    %v708 = vsel %vm706, %v700, %v707
    %vm709 = vcmp.eq.s32.totalorder %v704, 2
    %v710 = vxor.u32 %v700, 2147483648
    %v711 = vsel %vm709, %v710, %v701
    %v712 = vsel %vm705, %v708, %v711
    %v713 = vsel %vm702, nan, %v712
    %v714 = vand.u32 2147483647, %v392
    %vm715 = vcmp.le.f32.partialorder %v714, 0.7853982
    %vm716 = vcmp.lt.s32.totalorder %v392, 0
    %v717 = vand.u32 %v392, 2139095040
    %v718 = vshrl.u32 %v717, 23
    %v719 = vsub.s32 %v718, 127
    %v720 = vand.u32 2147483647, %v392
    %v721 = vand.u32 %v720, 8388607
    %v722 = vor.u32 %v721, 8388608
    %v723 = vsub.s32 0, %v722
    %v724 = vadd.s32 %v719, 1
    %vm725 = vcmp.gt.s32.totalorder %v724, 0
    %v726 = vsel %vm725, %v724, 0
    %v727 = vshrl.u32 %v726, 5
    %v728 = vand.u32 %v726, 31
    %v729 = vsub.s32 32, %v728
    %v730 = vshrl.u32 683565275, %v729
    %v731 = vshll.u32 683565275, %v728
    %v732 = vshrl.u32 2475754826, %v729
    %v733 = vor.u32 %v731, %v732
    %v734 = vshll.u32 2475754826, %v728
    %v735 = vshrl.u32 2131351028, %v729
    %v736 = vor.u32 %v734, %v735
    %v737 = vshll.u32 2131351028, %v728
    %v738 = vshrl.u32 2102212464, %v729
    %v739 = vor.u32 %v737, %v738
    %v740 = vshll.u32 2102212464, %v728
    %v741 = vshrl.u32 920167782, %v729
    %v742 = vor.u32 %v740, %v741
    %v743 = vshll.u32 920167782, %v728
    %v744 = vshrl.u32 1326507024, %v729
    %v745 = vor.u32 %v743, %v744
    %vm746 = vcmp.lt.s32.totalorder %v727, 1
    %vm747 = vcmp.lt.s32.totalorder %v727, 2
    %vm748 = vcmp.lt.s32.totalorder %v727, 3
    %vm749 = vcmp.lt.s32.totalorder %v727, 4
    %v750 = vsel %vm746, %v730, %v733
    %v751 = vsel %vm749, %v739, 2102212464
    %v752 = vsel %vm748, %v736, %v751
    %v753 = vsel %vm747, %v750, %v752
    %v754 = vsel %vm746, %v733, %v736
    %v755 = vsel %vm749, %v742, 920167782
    %v756 = vsel %vm748, %v739, %v755
    %v757 = vsel %vm747, %v754, %v756
    %v758 = vsel %vm746, %v736, %v739
    %v759 = vsel %vm749, %v745, 1326507024
    %v760 = vsel %vm748, %v742, %v759
    %v761 = vsel %vm747, %v758, %v760
    %v762 = vshll.u32 %v722, 8
    %v763 = vmul.u32.u64.compose %v762, %v761
    %v764 = vextract.low.u32 %v763
    %v765 = vextract.high.u32 %v763
    %v766 = vmul.u32.u64.compose %v762, %v757
    %v767 = vextract.low.u32 %v766
    %v768 = vextract.high.u32 %v766
    %v769 = vmul.u32 %v762, %v753
    %v770 = vadd.s32 %v765, %v767
    %vm771 = vc.u32 %v765, %v767
    %v772 = vadd.s32 %v768, 1
    %v773 = vsel %vm771, %v772, %v768
    %v774 = vadd.s32 %v769, %v773
    %v775 = vadd.s32 %v774, 536870912
    %v776 = vshrl.u32 %v775, 30
    %v777 = vshll.u32 %v776, 30
    %v778 = vsub.s32 %v774, %v777
    %vm779 = vcmp.lt.s32.totalorder %v778, 0
    %v780 = vsub.s32 0, %v778
    %v781 = vsel %vm779, %v780, %v778
    %v782 = vclz %v781
    %v783 = vsub.s32 %v782, 2
    %vm784 = vcmp.gt.s32.totalorder 0, %v783
    %v785 = vsel %vm784, 0, %v783
    %v786 = vsub.s32 32, %v785
    %v787 = vshll.u32 %v778, %v785
    %v788 = vshrl.u32 %v770, %v786
    %v789 = vor.u32 %v787, %v788
    %v790 = vsub.s32 4294967266, %v785
    %v791 = vadd.s32 %v790, 127
    %v792 = vshll.u32 %v791, 23
    %v793 = vor.u32 4788187, %v792
    %v794 = vand.u32 2147483647, %v793
    %v796 = vcvt.s32.f32 %v789
    %v797 = vmul.f32 %v796, %v794
    %v798 = vxor.u32 %v797, 2147483648
    %v799 = vsel %vm716, %v798, %v797
    %v800 = vsub.s32 4, %v776
    %v801 = vsel %vm716, %v800, %v776
    %v802 = vsel %vm715, %v392, %v799
    %v803 = vsel %vm715, 0, %v801
    %v804 = vcosq.f32.pop %v802
    %v805 = vsinq.f32.pop %v802
    %vm806 = vweird.f32 %v392
    %v807 = vadd.s32 %v803, 3
    %v808 = vand.u32 %v807, 3
    %vm809 = vcmp.lt.s32.totalorder %v808, 2
    %vm810 = vcmp.eq.s32.totalorder %v808, 0
    %v811 = vxor.u32 %v805, 2147483648
    %v812 = vsel %vm810, %v804, %v811
    %vm813 = vcmp.eq.s32.totalorder %v808, 2
    %v814 = vxor.u32 %v804, 2147483648
    %v815 = vsel %vm813, %v814, %v805
    %v816 = vsel %vm809, %v812, %v815
    %v817 = vsel %vm806, nan, %v816
    %v818 = vmul.f32 %v141, %v713
    %v819 = vmul.f32 %v142, %v817
    %v820 = vsel %vm143, %v818, 0.0
    %v821 = vsel %vm145, %v819, 0.0
    %v822 = vadd.f32 %v820, %v821
    %v823 = vrot.slane %v822, 4
    %v824 = vadd.f32 %v822, %v823
    %v825 = vrot.slane %v824, 2
    %v826 = vadd.f32 %v824, %v825
    %v827 = vrot.slane %v826, 1
    %v828 = vadd.f32 %v826, %v827
    %v829 = vmul.f32 %v288, 2.0
    %v830 = vadd.f32 %v282, %v829
    %v831 = vmul.f32 %v239, %v830
    %v832 = vsel %vm143, %v831, 0.0
    %v833 = vrot.slane %v832, 4
    %v834 = vadd.f32 %v832, %v833
    %v835 = vrot.slane %v834, 2
    %v836 = vadd.f32 %v834, %v835
    %v837 = vrot.slane %v836, 1
    %v838 = vadd.f32 %v836, %v837
    %v839 = vmul.f32 %v289, 2.0
    %v840 = vadd.f32 %v283, %v839
    %v841 = vmul.f32 %v239, %v840
    %v842 = vsel %vm143, %v841, 0.0
    %v843 = vrot.slane %v842, 4
    %v844 = vadd.f32 %v842, %v843
    %v845 = vrot.slane %v844, 2
    %v846 = vadd.f32 %v844, %v845
    %v847 = vrot.slane %v846, 1
    %v848 = vadd.f32 %v846, %v847
    %v849 = vmul.f32 %v290, 2.0
    %v850 = vadd.f32 %v284, %v849
    %v851 = vmul.f32 %v239, %v850
    %v852 = vsel %vm143, %v851, 0.0
    %v853 = vrot.slane %v852, 4
    %v854 = vadd.f32 %v852, %v853
    %v855 = vrot.slane %v854, 2
    %v856 = vadd.f32 %v854, %v855
    %v857 = vrot.slane %v856, 1
    %v858 = vadd.f32 %v856, %v857
    %v859 = vmul.f32 %v386, %v838
    %v860 = vmul.f32 %v387, %v858
    %v861 = vmul.f32 %v388, %v848
    %v862 = vmul.f32 %v609, %v859
    %v863 = vmul.f32 %v828, %v861
    %v864 = vadd.f32 %v862, %v863
    %v865 = vlaneseq
    %v866 = vshrl.u32 %v865, 7
    %v867 = vsub.s32 0, %v866
    %v868 = vrot.slane %v49, %v867
    %v869 = vadd.f32 %v864, %v868
    %v870 = vlaneseq
    %v871 = vshrl.u32 %v870, 7
    %v872 = vsub.s32 1, %v871
    %v873 = vrot.slane %v49, %v872
    %v874 = vadd.f32 %v860, %v873
    %v875 = vsub.f32 0.0, %v828
    %v876 = vmul.f32 %v875, %v859
    %v877 = vmul.f32 %v609, %v861
    %v878 = vadd.f32 %v876, %v877
    %v879 = vlaneseq
    %v880 = vshrl.u32 %v879, 7
    %v881 = vsub.s32 2, %v880
    %v882 = vrot.slane %v49, %v881
    %v883 = vadd.f32 %v878, %v882
    %v884 = vlaneseq
    %v885 = vshrl.u32 %v884, 7
    %v886 = vsub.s32 0, %v885
    %v887 = vrot.slane %v196, %v886
    %v888 = vadd.f32 %v887, %v384
    %v889 = vadd.f32 %v887, %v385
    %v890 = vmul.f32 %v141, %v888
    %v891 = vmul.f32 %v142, %v889
    %v892 = vsel %vm143, %v890, 0.0
    %v893 = vsel %vm145, %v891, 0.0
    %v894 = vadd.f32 %v892, %v893
    %v895 = vrot.slane %v894, 4
    %v896 = vadd.f32 %v894, %v895
    %v897 = vrot.slane %v896, 2
    %v898 = vadd.f32 %v896, %v897
    %v899 = vrot.slane %v898, 1
    %v900 = vadd.f32 %v898, %v899
    %v901 = vlaneseq
    %v902 = vshrl.u32 %v901, 7
    %v903 = vsub.s32 0, %v902
    %v904 = vrot.slane %v281, %v903
    %v905 = vadd.f32 %v282, %v904
    %v906 = vmul.f32 %v239, %v905
    %v907 = vsel %vm143, %v906, 0.0
    %v908 = vrot.slane %v907, 4
    %v909 = vadd.f32 %v907, %v908
    %v910 = vrot.slane %v909, 2
    %v911 = vadd.f32 %v909, %v910
    %v912 = vrot.slane %v911, 1
    %v913 = vadd.f32 %v911, %v912
    %v914 = vlaneseq
    %v915 = vshrl.u32 %v914, 7
    %v916 = vsub.s32 1, %v915
    %v917 = vrot.slane %v281, %v916
    %v918 = vadd.f32 %v283, %v917
    %v919 = vmul.f32 %v239, %v918
    %v920 = vsel %vm143, %v919, 0.0
    %v921 = vrot.slane %v920, 4
    %v922 = vadd.f32 %v920, %v921
    %v923 = vrot.slane %v922, 2
    %v924 = vadd.f32 %v922, %v923
    %v925 = vrot.slane %v924, 1
    %v926 = vadd.f32 %v924, %v925
    %v927 = vlaneseq
    %v928 = vshrl.u32 %v927, 7
    %v929 = vsub.s32 2, %v928
    %v930 = vrot.slane %v281, %v929
    %v931 = vadd.f32 %v284, %v930
    %v932 = vmul.f32 %v239, %v931
    %v933 = vsel %vm143, %v932, 0.0
    %v934 = vrot.slane %v933, 4
    %v935 = vadd.f32 %v933, %v934
    %v936 = vrot.slane %v935, 2
    %v937 = vadd.f32 %v935, %v936
    %v938 = vrot.slane %v937, 1
    %v939 = vadd.f32 %v937, %v938
    %v940 = vmul.f32 %v386, %v913
    %v941 = vmul.f32 %v387, %v939
    %v942 = vmul.f32 %v388, %v926
    %v943 = vand.u32 2147483647, %v900
    %vm944 = vcmp.le.f32.partialorder %v943, 0.7853982
    %vm945 = vcmp.lt.s32.totalorder %v900, 0
    %v946 = vand.u32 %v900, 2139095040
    %v947 = vshrl.u32 %v946, 23
    %v948 = vsub.s32 %v947, 127
    %v949 = vand.u32 2147483647, %v900
    %v950 = vand.u32 %v949, 8388607
    %v951 = vor.u32 %v950, 8388608
    %v952 = vsub.s32 0, %v951
    %v953 = vadd.s32 %v948, 1
    %vm954 = vcmp.gt.s32.totalorder %v953, 0
    %v955 = vsel %vm954, %v953, 0
    %v956 = vshrl.u32 %v955, 5
    %v957 = vand.u32 %v955, 31
    %v958 = vsub.s32 32, %v957
    %v959 = vshrl.u32 683565275, %v958
    %v960 = vshll.u32 683565275, %v957
    %v961 = vshrl.u32 2475754826, %v958
    %v962 = vor.u32 %v960, %v961
    %v963 = vshll.u32 2475754826, %v957
    %v964 = vshrl.u32 2131351028, %v958
    %v965 = vor.u32 %v963, %v964
    %v966 = vshll.u32 2131351028, %v957
    %v967 = vshrl.u32 2102212464, %v958
    %v968 = vor.u32 %v966, %v967
    %v969 = vshll.u32 2102212464, %v957
    %v970 = vshrl.u32 920167782, %v958
    %v971 = vor.u32 %v969, %v970
    %v972 = vshll.u32 920167782, %v957
    %v973 = vshrl.u32 1326507024, %v958
    %v974 = vor.u32 %v972, %v973
    %vm975 = vcmp.lt.s32.totalorder %v956, 1
    %vm976 = vcmp.lt.s32.totalorder %v956, 2
    %vm977 = vcmp.lt.s32.totalorder %v956, 3
    %vm978 = vcmp.lt.s32.totalorder %v956, 4
    %v979 = vsel %vm975, %v959, %v962
    %v980 = vsel %vm978, %v968, 2102212464
    %v981 = vsel %vm977, %v965, %v980
    %v982 = vsel %vm976, %v979, %v981
    %v983 = vsel %vm975, %v962, %v965
    %v984 = vsel %vm978, %v971, 920167782
    %v985 = vsel %vm977, %v968, %v984
    %v986 = vsel %vm976, %v983, %v985
    %v987 = vsel %vm975, %v965, %v968
    %v988 = vsel %vm978, %v974, 1326507024
    %v989 = vsel %vm977, %v971, %v988
    %v990 = vsel %vm976, %v987, %v989
    %v991 = vshll.u32 %v951, 8
    %v992 = vmul.u32.u64.compose %v991, %v990
    %v993 = vextract.low.u32 %v992
    %v994 = vextract.high.u32 %v992
    %v995 = vmul.u32.u64.compose %v991, %v986
    %v996 = vextract.low.u32 %v995
    %v997 = vextract.high.u32 %v995
    %v998 = vmul.u32 %v991, %v982
    %v999 = vadd.s32 %v994, %v996
    %vm1000 = vc.u32 %v994, %v996
    %v1001 = vadd.s32 %v997, 1
    %v1002 = vsel %vm1000, %v1001, %v997
    %v1003 = vadd.s32 %v998, %v1002
    %v1004 = vadd.s32 %v1003, 536870912
    %v1005 = vshrl.u32 %v1004, 30
    %v1006 = vshll.u32 %v1005, 30
    %v1007 = vsub.s32 %v1003, %v1006
    %vm1008 = vcmp.lt.s32.totalorder %v1007, 0
    %v1009 = vsub.s32 0, %v1007
    %v1010 = vsel %vm1008, %v1009, %v1007
    %v1011 = vclz %v1010
    %v1012 = vsub.s32 %v1011, 2
    %vm1013 = vcmp.gt.s32.totalorder 0, %v1012
    %v1014 = vsel %vm1013, 0, %v1012
    %v1015 = vsub.s32 32, %v1014
    %v1016 = vshll.u32 %v1007, %v1014
    %v1017 = vshrl.u32 %v999, %v1015
    %v1018 = vor.u32 %v1016, %v1017
    %v1019 = vsub.s32 4294967266, %v1014
    %v1020 = vadd.s32 %v1019, 127
    %v1021 = vshll.u32 %v1020, 23
    %v1022 = vor.u32 4788187, %v1021
    %v1023 = vand.u32 2147483647, %v1022
    %v1025 = vcvt.s32.f32 %v1018
    %v1026 = vmul.f32 %v1025, %v1023
    %v1027 = vxor.u32 %v1026, 2147483648
    %v1028 = vsel %vm945, %v1027, %v1026
    %v1029 = vsub.s32 4, %v1005
    %v1030 = vsel %vm945, %v1029, %v1005
    %v1031 = vsel %vm944, %v900, %v1028
    %v1032 = vsel %vm944, 0, %v1030
    %v1033 = vcosq.f32.pop %v1031
    %v1034 = vsinq.f32.pop %v1031
    %vm1035 = vweird.f32 %v900
    %v1036 = vand.u32 %v1032, 3
    %vm1037 = vcmp.lt.s32.totalorder %v1036, 2
    %vm1038 = vcmp.eq.s32.totalorder %v1036, 0
    %v1039 = vxor.u32 %v1034, 2147483648
    %v1040 = vsel %vm1038, %v1033, %v1039
    %vm1041 = vcmp.eq.s32.totalorder %v1036, 2
    %v1042 = vxor.u32 %v1033, 2147483648
    %v1043 = vsel %vm1041, %v1042, %v1034
    %v1044 = vsel %vm1037, %v1040, %v1043
    %v1045 = vsel %vm1035, nan, %v1044
    %v1046 = vand.u32 2147483647, %v900
    %vm1047 = vcmp.le.f32.partialorder %v1046, 0.7853982
    %vm1048 = vcmp.lt.s32.totalorder %v900, 0
    %v1049 = vand.u32 %v900, 2139095040
    %v1050 = vshrl.u32 %v1049, 23
    %v1051 = vsub.s32 %v1050, 127
    %v1052 = vand.u32 2147483647, %v900
    %v1053 = vand.u32 %v1052, 8388607
    %v1054 = vor.u32 %v1053, 8388608
    %v1055 = vsub.s32 0, %v1054
    %v1056 = vadd.s32 %v1051, 1
    %vm1057 = vcmp.gt.s32.totalorder %v1056, 0
    %v1058 = vsel %vm1057, %v1056, 0
    %v1059 = vshrl.u32 %v1058, 5
    %v1060 = vand.u32 %v1058, 31
    %v1061 = vsub.s32 32, %v1060
    %v1062 = vshrl.u32 683565275, %v1061
    %v1063 = vshll.u32 683565275, %v1060
    %v1064 = vshrl.u32 2475754826, %v1061
    %v1065 = vor.u32 %v1063, %v1064
    %v1066 = vshll.u32 2475754826, %v1060
    %v1067 = vshrl.u32 2131351028, %v1061
    %v1068 = vor.u32 %v1066, %v1067
    %v1069 = vshll.u32 2131351028, %v1060
    %v1070 = vshrl.u32 2102212464, %v1061
    %v1071 = vor.u32 %v1069, %v1070
    %v1072 = vshll.u32 2102212464, %v1060
    %v1073 = vshrl.u32 920167782, %v1061
    %v1074 = vor.u32 %v1072, %v1073
    %v1075 = vshll.u32 920167782, %v1060
    %v1076 = vshrl.u32 1326507024, %v1061
    %v1077 = vor.u32 %v1075, %v1076
    %vm1078 = vcmp.lt.s32.totalorder %v1059, 1
    %vm1079 = vcmp.lt.s32.totalorder %v1059, 2
    %vm1080 = vcmp.lt.s32.totalorder %v1059, 3
    %vm1081 = vcmp.lt.s32.totalorder %v1059, 4
    %v1082 = vsel %vm1078, %v1062, %v1065
    %v1083 = vsel %vm1081, %v1071, 2102212464
    %v1084 = vsel %vm1080, %v1068, %v1083
    %v1085 = vsel %vm1079, %v1082, %v1084
    %v1086 = vsel %vm1078, %v1065, %v1068
    %v1087 = vsel %vm1081, %v1074, 920167782
    %v1088 = vsel %vm1080, %v1071, %v1087
    %v1089 = vsel %vm1079, %v1086, %v1088
    %v1090 = vsel %vm1078, %v1068, %v1071
    %v1091 = vsel %vm1081, %v1077, 1326507024
    %v1092 = vsel %vm1080, %v1074, %v1091
    %v1093 = vsel %vm1079, %v1090, %v1092
    %v1094 = vshll.u32 %v1054, 8
    %v1095 = vmul.u32.u64.compose %v1094, %v1093
    %v1096 = vextract.low.u32 %v1095
    %v1097 = vextract.high.u32 %v1095
    %v1098 = vmul.u32.u64.compose %v1094, %v1089
    %v1099 = vextract.low.u32 %v1098
    %v1100 = vextract.high.u32 %v1098
    %v1101 = vmul.u32 %v1094, %v1085
    %v1102 = vadd.s32 %v1097, %v1099
    %vm1103 = vc.u32 %v1097, %v1099
    %v1104 = vadd.s32 %v1100, 1
    %v1105 = vsel %vm1103, %v1104, %v1100
    %v1106 = vadd.s32 %v1101, %v1105
    %v1107 = vadd.s32 %v1106, 536870912
    %v1108 = vshrl.u32 %v1107, 30
    %v1109 = vshll.u32 %v1108, 30
    %v1110 = vsub.s32 %v1106, %v1109
    %vm1111 = vcmp.lt.s32.totalorder %v1110, 0
    %v1112 = vsub.s32 0, %v1110
    %v1113 = vsel %vm1111, %v1112, %v1110
    %v1114 = vclz %v1113
    %v1115 = vsub.s32 %v1114, 2
    %vm1116 = vcmp.gt.s32.totalorder 0, %v1115
    %v1117 = vsel %vm1116, 0, %v1115
    %v1118 = vsub.s32 32, %v1117
    %v1119 = vshll.u32 %v1110, %v1117
    %v1120 = vshrl.u32 %v1102, %v1118
    %v1121 = vor.u32 %v1119, %v1120
    %v1122 = vsub.s32 4294967266, %v1117
    %v1123 = vadd.s32 %v1122, 127
    %v1124 = vshll.u32 %v1123, 23
    %v1125 = vor.u32 4788187, %v1124
    %v1126 = vand.u32 2147483647, %v1125
    %v1128 = vcvt.s32.f32 %v1121
    %v1129 = vmul.f32 %v1128, %v1126
    %v1130 = vxor.u32 %v1129, 2147483648
    %v1131 = vsel %vm1048, %v1130, %v1129
    %v1132 = vsub.s32 4, %v1108
    %v1133 = vsel %vm1048, %v1132, %v1108
    %v1134 = vsel %vm1047, %v900, %v1131
    %v1135 = vsel %vm1047, 0, %v1133
    %v1136 = vcosq.f32.pop %v1134
    %v1137 = vsinq.f32.pop %v1134
    %vm1138 = vweird.f32 %v900
    %v1139 = vadd.s32 %v1135, 3
    %v1140 = vand.u32 %v1139, 3
    %vm1141 = vcmp.lt.s32.totalorder %v1140, 2
    %vm1142 = vcmp.eq.s32.totalorder %v1140, 0
    %v1143 = vxor.u32 %v1137, 2147483648
    %v1144 = vsel %vm1142, %v1136, %v1143
    %vm1145 = vcmp.eq.s32.totalorder %v1140, 2
    %v1146 = vxor.u32 %v1136, 2147483648
    %v1147 = vsel %vm1145, %v1146, %v1137
    %v1148 = vsel %vm1141, %v1144, %v1147
    %v1149 = vsel %vm1138, nan, %v1148
    %v1150 = vmul.f32 %v1045, %v940
    %v1151 = vmul.f32 %v1149, %v942
    %v1152 = vadd.f32 %v1150, %v1151
    %v1153 = vsub.f32 0.0, %v1149
    %v1154 = vmul.f32 %v1153, %v940
    %v1155 = vmul.f32 %v1045, %v942
    %v1156 = vadd.f32 %v1154, %v1155
    %v1157 = vlaneseq
    %v1158 = vshrl.u32 %v1157, 7
    %v1159 = vsub.s32 1, %v1158
    %v1160 = vrot.slane %v51, %v1159
    %v1161 = vadd.f32 %v941, %v1160
    %v1162 = vsub.f32 %v874, %v1161
    %v1163 = vmul.f32 %v1162, %v1162
    %v1164 = vlaneseq
    %v1165 = vshrl.u32 %v1164, 7
    %v1166 = vsub.s32 0, %v1165
    %v1167 = vrot.slane %v51, %v1166
    %v1168 = vadd.f32 %v1152, %v1167
    %v1169 = vsub.f32 %v869, %v1168
    %v1170 = vlaneseq
    %v1171 = vshrl.u32 %v1170, 7
    %v1172 = vsub.s32 2, %v1171
    %v1173 = vrot.slane %v51, %v1172
    %v1174 = vadd.f32 %v1156, %v1173
    %v1175 = vsub.f32 %v883, %v1174
    %v1176 = vmul.f32 %v1169, %v1169
    %v1177 = vadd.f32 %v1176, %v1163
    %v1178 = vmul.f32 %v1175, %v1175
    %v1179 = vadd.f32 %v1177, %v1178
    %v1180 = vrsqrt.pop %v1179
    %v1181 = vmul.f32 %v1179, %v1180
    %vm1182 = vcmp.eq.f32.partialorder %v1179, inf
    %v1183 = vsel %vm1182, %v1179, %v1181
    %vm1184 = vcmp.eq.f32.partialorder %v1179, 0.0
    %v1185 = vand.u32 %v1179, 2147483648
    %v1186 = vsel %vm1184, %v1185, %v1183
    %v1187 = vsub.f32 %v1167, %v1152
    %v1188 = vsub.f32 %v869, %v1187
    %v1189 = vsub.f32 %v1173, %v1156
    %v1190 = vsub.f32 %v883, %v1189
    %v1191 = vmul.f32 %v1188, %v1188
    %v1192 = vadd.f32 %v1191, %v1163
    %v1193 = vmul.f32 %v1190, %v1190
    %v1194 = vadd.f32 %v1192, %v1193
    %v1195 = vrsqrt.pop %v1194
    %v1196 = vmul.f32 %v1194, %v1195
    %vm1197 = vcmp.eq.f32.partialorder %v1194, inf
    %v1198 = vsel %vm1197, %v1194, %v1196
    %vm1199 = vcmp.eq.f32.partialorder %v1194, 0.0
    %v1200 = vand.u32 %v1194, 2147483648
    %v1201 = vsel %vm1199, %v1200, %v1198
    %v1202 = vand.u32 2147483647, %v1186
    %vm1203 = vcmp.lt.f32.partialorder %v1202, 1.0
    %v1204 = vmul.f32 %v1186, 0.5
    %v1205 = vmul.f32 %v1204, %v1186
    %v1206 = vsub.f32 %v1202, 0.5
    %v1207 = vsel %vm1203, %v1205, %v1206
    %v1208 = vsel %vm143, %v1207, 0.0
    %v1209 = vrot.slane %v1208, 4
    %v1210 = vadd.f32 %v1208, %v1209
    %v1211 = vrot.slane %v1210, 2
    %v1212 = vadd.f32 %v1210, %v1211
    %v1213 = vrot.slane %v1212, 1
    %v1214 = vadd.f32 %v1212, %v1213
    %v1215 = vrcp.pop 8.0
    %v1216 = vmul.f32 %v1214, %v1215
    %v1217 = vand.u32 2147483647, %v1201
    %vm1218 = vcmp.lt.f32.partialorder %v1217, 1.0
    %v1219 = vmul.f32 %v1201, 0.5
    %v1220 = vmul.f32 %v1219, %v1201
    %v1221 = vsub.f32 %v1217, 0.5
    %v1222 = vsel %vm1218, %v1220, %v1221
    %v1223 = vsel %vm143, %v1222, 0.0
    %v1224 = vrot.slane %v1223, 4
    %v1225 = vadd.f32 %v1223, %v1224
    %v1226 = vrot.slane %v1225, 2
    %v1227 = vadd.f32 %v1225, %v1226
    %v1228 = vrot.slane %v1227, 1
    %v1229 = vadd.f32 %v1227, %v1228
    %v1230 = vmul.f32 %v1229, %v1215
    %v1231 = vmin.f32 %v1216, %v1230
    %v1232 = vsel %vm77, %v1231, 0.0
    %1233 = vadd.xlane.f32.xlu0 %v1232
    %v1234 = vpop.xlane.xlu0 %1233
    %v1235 = vrot.slane %v1234, 4
    %v1236 = vadd.f32 %v1234, %v1235
    %v1237 = vrot.slane %v1236, 2
    %v1238 = vadd.f32 %v1236, %v1237
    %v1239 = vrot.slane %v1238, 1
    %v1240 = vadd.f32 %v1238, %v1239
    %s1241 = vtos %v1240
    %v1242 = vstv %s1241
    %v1243 = vmul.f32 %v1242, %v69
    %v1244 = vadd.f32 %v90, %v195
    %v1245 = vadd.f32 %v1244, %v280
    %v1246 = vmul.f32 %v230, 20.0
    %v1247 = vadd.f32 %v1245, %v1246
    %v1248 = vmul.f32 %v383, 20.0
    %v1249 = vadd.f32 %v1247, %v1248
    %v1250 = vadd.f32 %v1249, %v124
    %v1251 = vmul.f32 %v1243, 0.001
    %v1252 = vadd.f32 %v1250, %v1251
    %v1253 = vadd.f32 %v48, %v1252
    %vm1254 = vcmask 0
    %1255 = vst.msk [vmem:[#allocation2] sm:$0x1] %vm1254, %v1253
    // Predicated region
    $region18: #{tpu_custom_call.1} parent=1 // pred_check
      _
    $region19: #{tpu_custom_call.1} parent=1 // pred_check_branch
      %1257 = sbr.rel (0) target = $region21
    $region20: #{tpu_custom_call.1} parent=1 // pred_region
      %s1259 = ssub.s32 16, 16
      %1260 = vsyncadd [#allocation3], %s1259
      %s1262 = sshll.u32 [#allocation2], 4
      %s1263 = int_to_ptr.vmem [resolvable:$true] %s1262
      %1265 = dma.vmem_to_hbm [thread:$0]  %s1263, 16, %s4, [#allocation3]
    $region21: #{tpu_custom_call.1} parent=1 // pred_fallthru
      _
    // Predicated region
    $region22: #{tpu_custom_call.1} parent=1 // pred_check
      _
    $region23: #{tpu_custom_call.1} parent=1 // pred_check_branch
      %1267 = sbr.rel (0) target = $region25
    $region24: #{tpu_custom_call.1} parent=1 // pred_region
      %1268 = dma.done [#allocation3], 16
    $region25: #{tpu_custom_call.1} parent=1 // pred_fallthru
      _
    %1269 = vsyncpa [#allocation3], 1

</llo_original>
